<compile_context>
chip_gen: v7x
topology: tpu7x:2x2x1
jax: 0.10.0
libtpu: 0.0.40
codegen_flags: <defaults>
</compile_context>

<pallas_src>
from functools import partial

import jax
import jax.numpy as jnp
from jax.experimental import pallas as pl
from jax.experimental.pallas import tpu as pltpu


# ---------------------------------------------------------------------------
# Fused forward kernel (one grid step = one batch element)
# ---------------------------------------------------------------------------
def _qnet_kernel(x_ref,
                 a1_ref, r1_ref, b1_ref,
                 a2_ref, r2_ref, b2_ref,
                 a3_ref, r3_ref, b3_ref,
                 n2w1_ref, n2b1_ref, n2w2_ref, n2b2_ref,
                 hw1_ref, hb1_ref, hw2_ref, hb2_ref,
                 o_ref, *, wo3):
    f32 = jnp.float32
    bf16 = jnp.bfloat16

    def conv_relu(m_bf16, a_ref, r_ref, b_ref):
        # m_bf16: (H_in, W_in*Cin).  Returns relu(conv) as (Ho, Wo*Cout) f32.
        ho = a_ref.shape[1]
        n_out = r_ref.shape[2]
        acc = jnp.zeros((ho, n_out), f32)
        for ki in range(3):  # 3 row-taps; the kj-sum is folded into r_ref at pack time
            rows = jnp.dot(a_ref[ki], m_bf16, preferred_element_type=f32)
            acc = acc + jnp.dot(rows.astype(bf16), r_ref[ki],
                                preferred_element_type=f32)
        return jnp.maximum(acc + b_ref[...], 0.0)

    def linear(v, w_ref, b_ref):
        return jnp.dot(v.astype(bf16), w_ref[...],
                       preferred_element_type=f32) + b_ref[...]

    # conv stack (activations stay in VMEM / registers)
    m = x_ref[0].astype(bf16)                         # (H, W*C0)
    h = conv_relu(m, a1_ref, r1_ref, b1_ref)          # (7, 7*8)
    h = conv_relu(h.astype(bf16), a2_ref, r2_ref, b2_ref)   # (3, 3*12)
    h = conv_relu(h.astype(bf16), a3_ref, r3_ref, b3_ref)   # (Ho3, Wo3*64)

    # global spatial max == torch.max(torch.max(x, dim=3).values, dim=2).values
    c_last = r3_ref.shape[2] // wo3
    g = jnp.max(h, axis=0, keepdims=True)             # max over output rows
    gm = g[:, 0:c_last]
    for wblk in range(1, wo3):                        # fold Wo lane blocks (no-op if wo3==1)
        gm = jnp.maximum(gm, g[:, wblk * c_last:(wblk + 1) * c_last])

    # net2 + merged dueling heads (combine folded into hw2/hb2 at pack time)
    z = jnp.maximum(linear(gm, n2w1_ref, n2b1_ref), 0.0)    # (1, 64)
    z = jnp.maximum(linear(z, n2w2_ref, n2b2_ref), 0.0)     # (1, 64)
    z = jnp.maximum(linear(z, hw1_ref, hb1_ref), 0.0)       # (1, 128) = adv|val hidden
    q = linear(z, hw2_ref, hb2_ref)                          # (1, action_count)
    o_ref[0] = q.astype(o_ref.dtype)


# ---------------------------------------------------------------------------
# One-time weight packing (plain JAX, outside the kernel)
# ---------------------------------------------------------------------------
def pack_params(params, obs_shape, action_count):
    """Expand conv weights into (A_ki, R_ki) selection/contraction matrices and
    merge/fold the dueling head. Done once per parameter set."""
    s0, s1, h_in, w_in = obs_shape
    packed = {}
    conv_defs = [("c1", s0 * s1, 8), ("c2", 8, 12), ("c3", 12, 64)]
    for li, (name, cin, cout) in enumerate(conv_defs, start=1):
        wmat = params[f"{name}_w"]          # (9*cin, cout), rows ordered (ki, kj, ci)
        bias = params[f"{name}_b"]          # (cout,)
        ho = (h_in - 3) // 2 + 1
        wo = (w_in - 3) // 2 + 1

        # A[ki]: (ho, h_in) 0/1 row selection: picks input row 2*ho + ki
        A = jnp.zeros((3, ho, h_in), jnp.float32)
        for ki in range(3):
            for r in range(ho):
                A = A.at[ki, r, 2 * r + ki].set(1.0)

        # R[ki]: (w_in*cin, wo*cout); stride-2 column selection + (kj, ci) contraction
        R = jnp.zeros((3, w_in, cin, wo, cout), jnp.float32)
        for ki in range(3):
            for kj in range(3):
                tap = (ki * 3 + kj) * cin
                w_tap = wmat[tap:tap + cin, :]             # (cin, cout)
                for wo_i in range(wo):
                    R = R.at[ki, 2 * wo_i + kj, :, wo_i, :].add(w_tap)
        R = R.reshape(3, w_in * cin, wo * cout)

        packed[f"A{li}"] = A.astype(jnp.bfloat16)
        packed[f"R{li}"] = R.astype(jnp.bfloat16)
        packed[f"b{li}"] = jnp.tile(bias, wo).reshape(1, wo * cout).astype(jnp.float32)
        h_in, w_in = ho, wo

    # net2
    packed["n2w1"] = params["n2_w1"].astype(jnp.bfloat16)
    packed["n2b1"] = params["n2_b1"].reshape(1, -1).astype(jnp.float32)
    packed["n2w2"] = params["n2_w2"].astype(jnp.bfloat16)
    packed["n2b2"] = params["n2_b2"].reshape(1, -1).astype(jnp.float32)

    # dueling head: merge first layers (lane-dense 128-wide), block-diag second
    # layers, then fold `v + a - mean(a)` into the weights (exact linear fold).
    a_cnt = action_count
    hw1 = jnp.concatenate([params["a_w1"], params["v_w1"]], axis=1)          # (64, 128)
    hb1 = jnp.concatenate([params["a_b1"], params["v_b1"]]).reshape(1, -1)   # (1, 128)
    w2 = jnp.zeros((128, a_cnt + 1), jnp.float32)
    w2 = w2.at[:64, :a_cnt].set(params["a_w2"])
    w2 = w2.at[64:, a_cnt:].set(params["v_w2"])
    b2 = jnp.concatenate([params["a_b2"], params["v_b2"]]).reshape(1, -1)    # (1, A+1)
    # q = [a | v] @ T  with  T = [[I - 1/A], [1 ... 1]]
    T = jnp.concatenate([jnp.eye(a_cnt, dtype=jnp.float32) - 1.0 / a_cnt,
                         jnp.ones((1, a_cnt), jnp.float32)], axis=0)         # (A+1, A)
    packed["hw1"] = hw1.astype(jnp.bfloat16)
    packed["hb1"] = hb1.astype(jnp.float32)
    packed["hw2"] = (w2 @ T).astype(jnp.bfloat16)                            # (128, A)
    packed["hb2"] = (b2 @ T).astype(jnp.float32)                             # (1, A)
    return packed


# ---------------------------------------------------------------------------
# Forward pass wrapper: one pallas_call, grid over batch
# ---------------------------------------------------------------------------
def qnet_forward(x, packed):
    # x: (B, S0, S1, H, W); torch.flatten(x, 1, 2) -> (B, C, H, W) with C=S0*S1.
    b, s0, s1, h, w = x.shape
    c = s0 * s1
    # single input relayout (XLA): NCHW -> per-sample (H, W*C) rows/lanes layout
    xm = jnp.transpose(x.reshape(b, c, h, w), (0, 2, 3, 1)).reshape(b, h, w * c)
    xm = xm.astype(jnp.float32)

    action_count = packed["hw2"].shape[1]
    wo3 = packed["b3"].shape[1] // 64          # conv3 output width (static)

    names = ["A1", "R1", "b1", "A2", "R2", "b2", "A3", "R3", "b3",
             "n2w1", "n2b1", "n2w2", "n2b2", "hw1", "hb1", "hw2", "hb2"]
    consts = [packed[n] for n in names]

    def whole_spec(arr):
        nd = arr.ndim
        return pl.BlockSpec(arr.shape, lambda i, _nd=nd: (0,) * _nd)

    in_specs = [pl.BlockSpec((1, h, w * c), lambda i: (i, 0, 0))]
    in_specs += [whole_spec(a) for a in consts]

    out = pl.pallas_call(
        partial(_qnet_kernel, wo3=wo3),
        grid=(b,),
        in_specs=in_specs,
        out_specs=pl.BlockSpec((1, 1, action_count), lambda i: (i, 0, 0)),
        out_shape=jax.ShapeDtypeStruct((b, 1, action_count), jnp.float32),
        compiler_params=pltpu.CompilerParams(dimension_semantics=("parallel",)),
    )(xm, *consts)
    return out.reshape(b, action_count)


# ---------------------------------------------------------------------------
# Deterministic parameter init (mirrors init_orthogonal for weights, small biases)
# ---------------------------------------------------------------------------
def init_params(key, channels, action_count):
    ortho = jax.nn.initializers.orthogonal()
    ks = jax.random.split(key, 9)

    def bias(n):
        return 0.01 * jnp.arange(n, dtype=jnp.float32)

    # Conv weights stored as (kh*kw*Cin, Cout) matrices (rows ordered ki, kj, ci);
    # linear weights as (in, out).
    return {
        "c1_w": ortho(ks[0], (9 * channels, 8), jnp.float32), "c1_b": bias(8),
        "c2_w": ortho(ks[1], (9 * 8, 12), jnp.float32),       "c2_b": bias(12),
        "c3_w": ortho(ks[2], (9 * 12, 64), jnp.float32),      "c3_b": bias(64),
        "n2_w1": ortho(ks[3], (64, 64), jnp.float32),         "n2_b1": bias(64),
        "n2_w2": ortho(ks[4], (64, 64), jnp.float32),         "n2_b2": bias(64),
        "a_w1": ortho(ks[5], (64, 64), jnp.float32),          "a_b1": bias(64),
        "a_w2": ortho(ks[6], (64, action_count), jnp.float32), "a_b2": bias(action_count),
        "v_w1": ortho(ks[7], (64, 64), jnp.float32),          "v_b1": bias(64),
        "v_w2": ortho(ks[8], (64, 1), jnp.float32),           "v_b2": bias(1),
    }


if __name__ == "__main__":
    key = jax.random.PRNGKey(0)
    k_x, k_p = jax.random.split(key)

    # obs_shape = (S0=2, S1=2, H=16, W=16) -> conv input channels = 4
    obs_shape = (2, 2, 16, 16)
    action_count = 5
    batch = 2

    x = jax.random.normal(k_x, (batch,) + obs_shape, dtype=jnp.float32)
    params = init_params(k_p, obs_shape[0] * obs_shape[1], action_count)
    packed = pack_params(params, obs_shape, action_count)

    fwd = jax.jit(qnet_forward)
    q = fwd(x, packed)
    q = jax.block_until_ready(q)

    assert q.shape == (batch, action_count), q.shape
    assert q.dtype == jnp.float32
    print("KERNEL_OK")
</pallas_src>

<mosaic_0001>
module attributes {stable_mosaic.version = 11 : i64} {
  func.func @_qnet_kernel(%arg0: i32, %arg1: memref<1x16x64xf32, #tpu.memory_space<vmem>>, %arg2: memref<3x7x16xbf16, #tpu.memory_space<vmem>>, %arg3: memref<3x64x56xbf16, #tpu.memory_space<vmem>>, %arg4: memref<1x56xf32, #tpu.memory_space<vmem>>, %arg5: memref<3x3x7xbf16, #tpu.memory_space<vmem>>, %arg6: memref<3x56x36xbf16, #tpu.memory_space<vmem>>, %arg7: memref<1x36xf32, #tpu.memory_space<vmem>>, %arg8: memref<3x1x3xbf16, #tpu.memory_space<vmem>>, %arg9: memref<3x36x64xbf16, #tpu.memory_space<vmem>>, %arg10: memref<1x64xf32, #tpu.memory_space<vmem>>, %arg11: memref<64x64xbf16, #tpu.memory_space<vmem>>, %arg12: memref<1x64xf32, #tpu.memory_space<vmem>>, %arg13: memref<64x64xbf16, #tpu.memory_space<vmem>>, %arg14: memref<1x64xf32, #tpu.memory_space<vmem>>, %arg15: memref<64x128xbf16, #tpu.memory_space<vmem>>, %arg16: memref<1x128xf32, #tpu.memory_space<vmem>>, %arg17: memref<128x5xbf16, #tpu.memory_space<vmem>>, %arg18: memref<1x5xf32, #tpu.memory_space<vmem>>, %arg19: memref<1x1x5xf32, #tpu.memory_space<vmem>>) attributes {dimension_semantics = [#tpu.dimension_semantics<parallel>], iteration_bounds = array<i64: 2>, scalar_prefetch = 0 : i64, scratch_operands = 0 : i64, tpu.core_type = #tpu.core_type<tc>, window_params = [{transform_indices = @transform_0, window_bounds = array<i64: 1, 16, 64>}, {pipeline_mode = #tpu.pipeline_mode<synchronous>, transform_indices = @transform_1, window_bounds = array<i64: 3, 7, 16>}, {pipeline_mode = #tpu.pipeline_mode<synchronous>, transform_indices = @transform_2, window_bounds = array<i64: 3, 64, 56>}, {pipeline_mode = #tpu.pipeline_mode<synchronous>, transform_indices = @transform_3, window_bounds = array<i64: 1, 56>}, {pipeline_mode = #tpu.pipeline_mode<synchronous>, transform_indices = @transform_4, window_bounds = array<i64: 3, 3, 7>}, {pipeline_mode = #tpu.pipeline_mode<synchronous>, transform_indices = @transform_5, window_bounds = array<i64: 3, 56, 36>}, {pipeline_mode = #tpu.pipeline_mode<synchronous>, transform_indices = @transform_6, window_bounds = array<i64: 1, 36>}, {pipeline_mode = #tpu.pipeline_mode<synchronous>, transform_indices = @transform_7, window_bounds = array<i64: 3, 1, 3>}, {pipeline_mode = #tpu.pipeline_mode<synchronous>, transform_indices = @transform_8, window_bounds = array<i64: 3, 36, 64>}, {pipeline_mode = #tpu.pipeline_mode<synchronous>, transform_indices = @transform_9, window_bounds = array<i64: 1, 64>}, {pipeline_mode = #tpu.pipeline_mode<synchronous>, transform_indices = @transform_10, window_bounds = array<i64: 64, 64>}, {pipeline_mode = #tpu.pipeline_mode<synchronous>, transform_indices = @transform_11, window_bounds = array<i64: 1, 64>}, {pipeline_mode = #tpu.pipeline_mode<synchronous>, transform_indices = @transform_12, window_bounds = array<i64: 64, 64>}, {pipeline_mode = #tpu.pipeline_mode<synchronous>, transform_indices = @transform_13, window_bounds = array<i64: 1, 64>}, {pipeline_mode = #tpu.pipeline_mode<synchronous>, transform_indices = @transform_14, window_bounds = array<i64: 64, 128>}, {pipeline_mode = #tpu.pipeline_mode<synchronous>, transform_indices = @transform_15, window_bounds = array<i64: 1, 128>}, {pipeline_mode = #tpu.pipeline_mode<synchronous>, transform_indices = @transform_16, window_bounds = array<i64: 128, 5>}, {pipeline_mode = #tpu.pipeline_mode<synchronous>, transform_indices = @transform_17, window_bounds = array<i64: 1, 5>}, {transform_indices = @transform_18, window_bounds = array<i64: 1, 1, 5>}]} {
    %c0 = arith.constant 0 : index
    %c0_0 = arith.constant 0 : index
    %c0_1 = arith.constant 0 : index
    %0 = vector.load %arg1[%c0, %c0_0, %c0_1] : memref<1x16x64xf32, #tpu.memory_space<vmem>>, vector<1x16x64xf32>
    %1 = vector.shape_cast %0 : vector<1x16x64xf32> to vector<16x64xf32>
    %2 = arith.truncf %1 : vector<16x64xf32> to vector<16x64xbf16>
    %cst = arith.constant 0.000000e+00 : f32
    %3 = vector.broadcast %cst : f32 to vector<7x56xf32>
    %c0_2 = arith.constant 0 : index
    %c0_3 = arith.constant 0 : index
    %c0_4 = arith.constant 0 : index
    %4 = vector.load %arg2[%c0_2, %c0_3, %c0_4] : memref<3x7x16xbf16, #tpu.memory_space<vmem>>, vector<1x7x16xbf16>
    %5 = vector.shape_cast %4 : vector<1x7x16xbf16> to vector<7x16xbf16>
    %cst_5 = arith.constant dense<0.000000e+00> : vector<7x64xf32>
    %6 = tpu.matmul %5, %2, %cst_5 {dimension_numbers = #tpu.dot_dimension_numbers<[1], [0], [0], [1], [0, 0, 1, 1], [], []>} : vector<7x16xbf16>, vector<16x64xbf16>, vector<7x64xf32> -> vector<7x64xf32>
    %7 = arith.truncf %6 : vector<7x64xf32> to vector<7x64xbf16>
    %c0_6 = arith.constant 0 : index
    %c0_7 = arith.constant 0 : index
    %c0_8 = arith.constant 0 : index
    %8 = vector.load %arg3[%c0_6, %c0_7, %c0_8] : memref<3x64x56xbf16, #tpu.memory_space<vmem>>, vector<1x64x56xbf16>
    %9 = vector.shape_cast %8 : vector<1x64x56xbf16> to vector<64x56xbf16>
    %cst_9 = arith.constant dense<0.000000e+00> : vector<7x56xf32>
    %10 = tpu.matmul %7, %9, %cst_9 {dimension_numbers = #tpu.dot_dimension_numbers<[1], [0], [0], [1], [0, 0, 1, 1], [], []>} : vector<7x64xbf16>, vector<64x56xbf16>, vector<7x56xf32> -> vector<7x56xf32>
    %11 = arith.addf %3, %10 : vector<7x56xf32>
    %c1 = arith.constant 1 : index
    %c0_10 = arith.constant 0 : index
    %c0_11 = arith.constant 0 : index
    %12 = vector.load %arg2[%c1, %c0_10, %c0_11] : memref<3x7x16xbf16, #tpu.memory_space<vmem>>, vector<1x7x16xbf16>
    %13 = vector.shape_cast %12 : vector<1x7x16xbf16> to vector<7x16xbf16>
    %cst_12 = arith.constant dense<0.000000e+00> : vector<7x64xf32>
    %14 = tpu.matmul %13, %2, %cst_12 {dimension_numbers = #tpu.dot_dimension_numbers<[1], [0], [0], [1], [0, 0, 1, 1], [], []>} : vector<7x16xbf16>, vector<16x64xbf16>, vector<7x64xf32> -> vector<7x64xf32>
    %15 = arith.truncf %14 : vector<7x64xf32> to vector<7x64xbf16>
    %c1_13 = arith.constant 1 : index
    %c0_14 = arith.constant 0 : index
    %c0_15 = arith.constant 0 : index
    %16 = vector.load %arg3[%c1_13, %c0_14, %c0_15] : memref<3x64x56xbf16, #tpu.memory_space<vmem>>, vector<1x64x56xbf16>
    %17 = vector.shape_cast %16 : vector<1x64x56xbf16> to vector<64x56xbf16>
    %cst_16 = arith.constant dense<0.000000e+00> : vector<7x56xf32>
    %18 = tpu.matmul %15, %17, %cst_16 {dimension_numbers = #tpu.dot_dimension_numbers<[1], [0], [0], [1], [0, 0, 1, 1], [], []>} : vector<7x64xbf16>, vector<64x56xbf16>, vector<7x56xf32> -> vector<7x56xf32>
    %19 = arith.addf %11, %18 : vector<7x56xf32>
    %c2 = arith.constant 2 : index
    %c0_17 = arith.constant 0 : index
    %c0_18 = arith.constant 0 : index
    %20 = vector.load %arg2[%c2, %c0_17, %c0_18] : memref<3x7x16xbf16, #tpu.memory_space<vmem>>, vector<1x7x16xbf16>
    %21 = vector.shape_cast %20 : vector<1x7x16xbf16> to vector<7x16xbf16>
    %cst_19 = arith.constant dense<0.000000e+00> : vector<7x64xf32>
    %22 = tpu.matmul %21, %2, %cst_19 {dimension_numbers = #tpu.dot_dimension_numbers<[1], [0], [0], [1], [0, 0, 1, 1], [], []>} : vector<7x16xbf16>, vector<16x64xbf16>, vector<7x64xf32> -> vector<7x64xf32>
    %23 = arith.truncf %22 : vector<7x64xf32> to vector<7x64xbf16>
    %c2_20 = arith.constant 2 : index
    %c0_21 = arith.constant 0 : index
    %c0_22 = arith.constant 0 : index
    %24 = vector.load %arg3[%c2_20, %c0_21, %c0_22] : memref<3x64x56xbf16, #tpu.memory_space<vmem>>, vector<1x64x56xbf16>
    %25 = vector.shape_cast %24 : vector<1x64x56xbf16> to vector<64x56xbf16>
    %cst_23 = arith.constant dense<0.000000e+00> : vector<7x56xf32>
    %26 = tpu.matmul %23, %25, %cst_23 {dimension_numbers = #tpu.dot_dimension_numbers<[1], [0], [0], [1], [0, 0, 1, 1], [], []>} : vector<7x64xbf16>, vector<64x56xbf16>, vector<7x56xf32> -> vector<7x56xf32>
    %27 = arith.addf %19, %26 : vector<7x56xf32>
    %c0_24 = arith.constant 0 : index
    %c0_25 = arith.constant 0 : index
    %28 = vector.load %arg4[%c0_24, %c0_25] : memref<1x56xf32, #tpu.memory_space<vmem>>, vector<1x56xf32>
    %29 = vector.broadcast %28 : vector<1x56xf32> to vector<7x56xf32>
    %30 = arith.addf %27, %29 : vector<7x56xf32>
    %cst_26 = arith.constant 0.000000e+00 : f32
    %31 = vector.broadcast %cst_26 : f32 to vector<7x56xf32>
    %32 = arith.maximumf %30, %31 : vector<7x56xf32>
    %33 = arith.truncf %32 : vector<7x56xf32> to vector<7x56xbf16>
    %cst_27 = arith.constant 0.000000e+00 : f32
    %34 = vector.broadcast %cst_27 : f32 to vector<3x36xf32>
    %c0_28 = arith.constant 0 : index
    %c0_29 = arith.constant 0 : index
    %c0_30 = arith.constant 0 : index
    %35 = vector.load %arg5[%c0_28, %c0_29, %c0_30] : memref<3x3x7xbf16, #tpu.memory_space<vmem>>, vector<1x3x7xbf16>
    %36 = vector.shape_cast %35 : vector<1x3x7xbf16> to vector<3x7xbf16>
    %cst_31 = arith.constant dense<0.000000e+00> : vector<3x56xf32>
    %37 = tpu.matmul %36, %33, %cst_31 {dimension_numbers = #tpu.dot_dimension_numbers<[1], [0], [0], [1], [0, 0, 1, 1], [], []>} : vector<3x7xbf16>, vector<7x56xbf16>, vector<3x56xf32> -> vector<3x56xf32>
    %38 = arith.truncf %37 : vector<3x56xf32> to vector<3x56xbf16>
    %c0_32 = arith.constant 0 : index
    %c0_33 = arith.constant 0 : index
    %c0_34 = arith.constant 0 : index
    %39 = vector.load %arg6[%c0_32, %c0_33, %c0_34] : memref<3x56x36xbf16, #tpu.memory_space<vmem>>, vector<1x56x36xbf16>
    %40 = vector.shape_cast %39 : vector<1x56x36xbf16> to vector<56x36xbf16>
    %cst_35 = arith.constant dense<0.000000e+00> : vector<3x36xf32>
    %41 = tpu.matmul %38, %40, %cst_35 {dimension_numbers = #tpu.dot_dimension_numbers<[1], [0], [0], [1], [0, 0, 1, 1], [], []>} : vector<3x56xbf16>, vector<56x36xbf16>, vector<3x36xf32> -> vector<3x36xf32>
    %42 = arith.addf %34, %41 : vector<3x36xf32>
    %c1_36 = arith.constant 1 : index
    %c0_37 = arith.constant 0 : index
    %c0_38 = arith.constant 0 : index
    %43 = vector.load %arg5[%c1_36, %c0_37, %c0_38] : memref<3x3x7xbf16, #tpu.memory_space<vmem>>, vector<1x3x7xbf16>
    %44 = vector.shape_cast %43 : vector<1x3x7xbf16> to vector<3x7xbf16>
    %cst_39 = arith.constant dense<0.000000e+00> : vector<3x56xf32>
    %45 = tpu.matmul %44, %33, %cst_39 {dimension_numbers = #tpu.dot_dimension_numbers<[1], [0], [0], [1], [0, 0, 1, 1], [], []>} : vector<3x7xbf16>, vector<7x56xbf16>, vector<3x56xf32> -> vector<3x56xf32>
    %46 = arith.truncf %45 : vector<3x56xf32> to vector<3x56xbf16>
    %c1_40 = arith.constant 1 : index
    %c0_41 = arith.constant 0 : index
    %c0_42 = arith.constant 0 : index
    %47 = vector.load %arg6[%c1_40, %c0_41, %c0_42] : memref<3x56x36xbf16, #tpu.memory_space<vmem>>, vector<1x56x36xbf16>
    %48 = vector.shape_cast %47 : vector<1x56x36xbf16> to vector<56x36xbf16>
    %cst_43 = arith.constant dense<0.000000e+00> : vector<3x36xf32>
    %49 = tpu.matmul %46, %48, %cst_43 {dimension_numbers = #tpu.dot_dimension_numbers<[1], [0], [0], [1], [0, 0, 1, 1], [], []>} : vector<3x56xbf16>, vector<56x36xbf16>, vector<3x36xf32> -> vector<3x36xf32>
    %50 = arith.addf %42, %49 : vector<3x36xf32>
    %c2_44 = arith.constant 2 : index
    %c0_45 = arith.constant 0 : index
    %c0_46 = arith.constant 0 : index
    %51 = vector.load %arg5[%c2_44, %c0_45, %c0_46] : memref<3x3x7xbf16, #tpu.memory_space<vmem>>, vector<1x3x7xbf16>
    %52 = vector.shape_cast %51 : vector<1x3x7xbf16> to vector<3x7xbf16>
    %cst_47 = arith.constant dense<0.000000e+00> : vector<3x56xf32>
    %53 = tpu.matmul %52, %33, %cst_47 {dimension_numbers = #tpu.dot_dimension_numbers<[1], [0], [0], [1], [0, 0, 1, 1], [], []>} : vector<3x7xbf16>, vector<7x56xbf16>, vector<3x56xf32> -> vector<3x56xf32>
    %54 = arith.truncf %53 : vector<3x56xf32> to vector<3x56xbf16>
    %c2_48 = arith.constant 2 : index
    %c0_49 = arith.constant 0 : index
    %c0_50 = arith.constant 0 : index
    %55 = vector.load %arg6[%c2_48, %c0_49, %c0_50] : memref<3x56x36xbf16, #tpu.memory_space<vmem>>, vector<1x56x36xbf16>
    %56 = vector.shape_cast %55 : vector<1x56x36xbf16> to vector<56x36xbf16>
    %cst_51 = arith.constant dense<0.000000e+00> : vector<3x36xf32>
    %57 = tpu.matmul %54, %56, %cst_51 {dimension_numbers = #tpu.dot_dimension_numbers<[1], [0], [0], [1], [0, 0, 1, 1], [], []>} : vector<3x56xbf16>, vector<56x36xbf16>, vector<3x36xf32> -> vector<3x36xf32>
    %58 = arith.addf %50, %57 : vector<3x36xf32>
    %c0_52 = arith.constant 0 : index
    %c0_53 = arith.constant 0 : index
    %59 = vector.load %arg7[%c0_52, %c0_53] : memref<1x36xf32, #tpu.memory_space<vmem>>, vector<1x36xf32>
    %60 = vector.broadcast %59 : vector<1x36xf32> to vector<3x36xf32>
    %61 = arith.addf %58, %60 : vector<3x36xf32>
    %cst_54 = arith.constant 0.000000e+00 : f32
    %62 = vector.broadcast %cst_54 : f32 to vector<3x36xf32>
    %63 = arith.maximumf %61, %62 : vector<3x36xf32>
    %64 = arith.truncf %63 : vector<3x36xf32> to vector<3x36xbf16>
    %cst_55 = arith.constant 0.000000e+00 : f32
    %65 = vector.broadcast %cst_55 : f32 to vector<1x64xf32>
    %c0_56 = arith.constant 0 : index
    %c0_57 = arith.constant 0 : index
    %c0_58 = arith.constant 0 : index
    %66 = vector.load %arg8[%c0_56, %c0_57, %c0_58] : memref<3x1x3xbf16, #tpu.memory_space<vmem>>, vector<1x1x3xbf16>
    %67 = vector.shape_cast %66 : vector<1x1x3xbf16> to vector<1x3xbf16>
    %cst_59 = arith.constant dense<0.000000e+00> : vector<1x36xf32>
    %68 = tpu.matmul %67, %64, %cst_59 {dimension_numbers = #tpu.dot_dimension_numbers<[1], [0], [0], [1], [0, 0, 1, 1], [], []>} : vector<1x3xbf16>, vector<3x36xbf16>, vector<1x36xf32> -> vector<1x36xf32>
    %69 = arith.truncf %68 : vector<1x36xf32> to vector<1x36xbf16>
    %c0_60 = arith.constant 0 : index
    %c0_61 = arith.constant 0 : index
    %c0_62 = arith.constant 0 : index
    %70 = vector.load %arg9[%c0_60, %c0_61, %c0_62] : memref<3x36x64xbf16, #tpu.memory_space<vmem>>, vector<1x36x64xbf16>
    %71 = vector.shape_cast %70 : vector<1x36x64xbf16> to vector<36x64xbf16>
    %cst_63 = arith.constant dense<0.000000e+00> : vector<1x64xf32>
    %72 = tpu.matmul %69, %71, %cst_63 {dimension_numbers = #tpu.dot_dimension_numbers<[1], [0], [0], [1], [0, 0, 1, 1], [], []>} : vector<1x36xbf16>, vector<36x64xbf16>, vector<1x64xf32> -> vector<1x64xf32>
    %73 = arith.addf %65, %72 : vector<1x64xf32>
    %c1_64 = arith.constant 1 : index
    %c0_65 = arith.constant 0 : index
    %c0_66 = arith.constant 0 : index
    %74 = vector.load %arg8[%c1_64, %c0_65, %c0_66] : memref<3x1x3xbf16, #tpu.memory_space<vmem>>, vector<1x1x3xbf16>
    %75 = vector.shape_cast %74 : vector<1x1x3xbf16> to vector<1x3xbf16>
    %cst_67 = arith.constant dense<0.000000e+00> : vector<1x36xf32>
    %76 = tpu.matmul %75, %64, %cst_67 {dimension_numbers = #tpu.dot_dimension_numbers<[1], [0], [0], [1], [0, 0, 1, 1], [], []>} : vector<1x3xbf16>, vector<3x36xbf16>, vector<1x36xf32> -> vector<1x36xf32>
    %77 = arith.truncf %76 : vector<1x36xf32> to vector<1x36xbf16>
    %c1_68 = arith.constant 1 : index
    %c0_69 = arith.constant 0 : index
    %c0_70 = arith.constant 0 : index
    %78 = vector.load %arg9[%c1_68, %c0_69, %c0_70] : memref<3x36x64xbf16, #tpu.memory_space<vmem>>, vector<1x36x64xbf16>
    %79 = vector.shape_cast %78 : vector<1x36x64xbf16> to vector<36x64xbf16>
    %cst_71 = arith.constant dense<0.000000e+00> : vector<1x64xf32>
    %80 = tpu.matmul %77, %79, %cst_71 {dimension_numbers = #tpu.dot_dimension_numbers<[1], [0], [0], [1], [0, 0, 1, 1], [], []>} : vector<1x36xbf16>, vector<36x64xbf16>, vector<1x64xf32> -> vector<1x64xf32>
    %81 = arith.addf %73, %80 : vector<1x64xf32>
    %c2_72 = arith.constant 2 : index
    %c0_73 = arith.constant 0 : index
    %c0_74 = arith.constant 0 : index
    %82 = vector.load %arg8[%c2_72, %c0_73, %c0_74] : memref<3x1x3xbf16, #tpu.memory_space<vmem>>, vector<1x1x3xbf16>
    %83 = vector.shape_cast %82 : vector<1x1x3xbf16> to vector<1x3xbf16>
    %cst_75 = arith.constant dense<0.000000e+00> : vector<1x36xf32>
    %84 = tpu.matmul %83, %64, %cst_75 {dimension_numbers = #tpu.dot_dimension_numbers<[1], [0], [0], [1], [0, 0, 1, 1], [], []>} : vector<1x3xbf16>, vector<3x36xbf16>, vector<1x36xf32> -> vector<1x36xf32>
    %85 = arith.truncf %84 : vector<1x36xf32> to vector<1x36xbf16>
    %c2_76 = arith.constant 2 : index
    %c0_77 = arith.constant 0 : index
    %c0_78 = arith.constant 0 : index
    %86 = vector.load %arg9[%c2_76, %c0_77, %c0_78] : memref<3x36x64xbf16, #tpu.memory_space<vmem>>, vector<1x36x64xbf16>
    %87 = vector.shape_cast %86 : vector<1x36x64xbf16> to vector<36x64xbf16>
    %cst_79 = arith.constant dense<0.000000e+00> : vector<1x64xf32>
    %88 = tpu.matmul %85, %87, %cst_79 {dimension_numbers = #tpu.dot_dimension_numbers<[1], [0], [0], [1], [0, 0, 1, 1], [], []>} : vector<1x36xbf16>, vector<36x64xbf16>, vector<1x64xf32> -> vector<1x64xf32>
    %89 = arith.addf %81, %88 : vector<1x64xf32>
    %c0_80 = arith.constant 0 : index
    %c0_81 = arith.constant 0 : index
    %90 = vector.load %arg10[%c0_80, %c0_81] : memref<1x64xf32, #tpu.memory_space<vmem>>, vector<1x64xf32>
    %91 = arith.addf %89, %90 : vector<1x64xf32>
    %cst_82 = arith.constant 0.000000e+00 : f32
    %92 = vector.broadcast %cst_82 : f32 to vector<1x64xf32>
    %93 = arith.maximumf %91, %92 : vector<1x64xf32>
    %cst_83 = arith.constant dense<0xFF800000> : vector<64xf32>
    %94 = vector.multi_reduction <maximumf>, %93, %cst_83 [0] : vector<1x64xf32> to vector<64xf32>
    %95 = vector.shape_cast %94 : vector<64xf32> to vector<1x64xf32>
    %96 = arith.truncf %95 : vector<1x64xf32> to vector<1x64xbf16>
    %c0_84 = arith.constant 0 : index
    %c0_85 = arith.constant 0 : index
    %97 = vector.load %arg11[%c0_84, %c0_85] : memref<64x64xbf16, #tpu.memory_space<vmem>>, vector<64x64xbf16>
    %cst_86 = arith.constant dense<0.000000e+00> : vector<1x64xf32>
    %98 = tpu.matmul %96, %97, %cst_86 {dimension_numbers = #tpu.dot_dimension_numbers<[1], [0], [0], [1], [0, 0, 1, 1], [], []>} : vector<1x64xbf16>, vector<64x64xbf16>, vector<1x64xf32> -> vector<1x64xf32>
    %c0_87 = arith.constant 0 : index
    %c0_88 = arith.constant 0 : index
    %99 = vector.load %arg12[%c0_87, %c0_88] : memref<1x64xf32, #tpu.memory_space<vmem>>, vector<1x64xf32>
    %100 = arith.addf %98, %99 : vector<1x64xf32>
    %cst_89 = arith.constant 0.000000e+00 : f32
    %101 = vector.broadcast %cst_89 : f32 to vector<1x64xf32>
    %102 = arith.maximumf %100, %101 : vector<1x64xf32>
    %103 = arith.truncf %102 : vector<1x64xf32> to vector<1x64xbf16>
    %c0_90 = arith.constant 0 : index
    %c0_91 = arith.constant 0 : index
    %104 = vector.load %arg13[%c0_90, %c0_91] : memref<64x64xbf16, #tpu.memory_space<vmem>>, vector<64x64xbf16>
    %cst_92 = arith.constant dense<0.000000e+00> : vector<1x64xf32>
    %105 = tpu.matmul %103, %104, %cst_92 {dimension_numbers = #tpu.dot_dimension_numbers<[1], [0], [0], [1], [0, 0, 1, 1], [], []>} : vector<1x64xbf16>, vector<64x64xbf16>, vector<1x64xf32> -> vector<1x64xf32>
    %c0_93 = arith.constant 0 : index
    %c0_94 = arith.constant 0 : index
    %106 = vector.load %arg14[%c0_93, %c0_94] : memref<1x64xf32, #tpu.memory_space<vmem>>, vector<1x64xf32>
    %107 = arith.addf %105, %106 : vector<1x64xf32>
    %cst_95 = arith.constant 0.000000e+00 : f32
    %108 = vector.broadcast %cst_95 : f32 to vector<1x64xf32>
    %109 = arith.maximumf %107, %108 : vector<1x64xf32>
    %110 = arith.truncf %109 : vector<1x64xf32> to vector<1x64xbf16>
    %c0_96 = arith.constant 0 : index
    %c0_97 = arith.constant 0 : index
    %111 = vector.load %arg15[%c0_96, %c0_97] : memref<64x128xbf16, #tpu.memory_space<vmem>>, vector<64x128xbf16>
    %cst_98 = arith.constant dense<0.000000e+00> : vector<1x128xf32>
    %112 = tpu.matmul %110, %111, %cst_98 {dimension_numbers = #tpu.dot_dimension_numbers<[1], [0], [0], [1], [0, 0, 1, 1], [], []>} : vector<1x64xbf16>, vector<64x128xbf16>, vector<1x128xf32> -> vector<1x128xf32>
    %c0_99 = arith.constant 0 : index
    %c0_100 = arith.constant 0 : index
    %113 = vector.load %arg16[%c0_99, %c0_100] : memref<1x128xf32, #tpu.memory_space<vmem>>, vector<1x128xf32>
    %114 = arith.addf %112, %113 : vector<1x128xf32>
    %cst_101 = arith.constant 0.000000e+00 : f32
    %115 = vector.broadcast %cst_101 : f32 to vector<1x128xf32>
    %116 = arith.maximumf %114, %115 : vector<1x128xf32>
    %117 = arith.truncf %116 : vector<1x128xf32> to vector<1x128xbf16>
    %c0_102 = arith.constant 0 : index
    %c0_103 = arith.constant 0 : index
    %118 = vector.load %arg17[%c0_102, %c0_103] : memref<128x5xbf16, #tpu.memory_space<vmem>>, vector<128x5xbf16>
    %cst_104 = arith.constant dense<0.000000e+00> : vector<1x5xf32>
    %119 = tpu.matmul %117, %118, %cst_104 {dimension_numbers = #tpu.dot_dimension_numbers<[1], [0], [0], [1], [0, 0, 1, 1], [], []>} : vector<1x128xbf16>, vector<128x5xbf16>, vector<1x5xf32> -> vector<1x5xf32>
    %c0_105 = arith.constant 0 : index
    %c0_106 = arith.constant 0 : index
    %120 = vector.load %arg18[%c0_105, %c0_106] : memref<1x5xf32, #tpu.memory_space<vmem>>, vector<1x5xf32>
    %121 = arith.addf %119, %120 : vector<1x5xf32>
    %c0_107 = arith.constant 0 : index
    %c0_108 = arith.constant 0 : index
    %c0_109 = arith.constant 0 : index
    %122 = vector.load %arg19[%c0_107, %c0_108, %c0_109] : memref<1x1x5xf32, #tpu.memory_space<vmem>>, vector<1x1x5xf32>
    %123 = vector.shape_cast %122 : vector<1x1x5xf32> to vector<1x5xf32>
    %124 = vector.shape_cast %121 : vector<1x5xf32> to vector<1x1x5xf32>
    tpu.vector_store %arg19[%c0_107, %c0_108, %c0_109], %124 {strides = array<i32>} : memref<1x1x5xf32, #tpu.memory_space<vmem>>, vector<1x1x5xf32>,
    return
  }
  func.func @transform_0(%arg0: i32) -> (i32, i32, i32) {
    %c0_i32 = arith.constant 0 : i32
    %c0_i32_0 = arith.constant 0 : i32
    %c0_i32_1 = arith.constant 0 : i32
    return %arg0, %c0_i32, %c0_i32_0 : i32, i32, i32
  }
  func.func @transform_1(%arg0: i32) -> (i32, i32, i32) {
    %c0_i32 = arith.constant 0 : i32
    %c0_i32_0 = arith.constant 0 : i32
    %c0_i32_1 = arith.constant 0 : i32
    %c0_i32_2 = arith.constant 0 : i32
    return %c0_i32, %c0_i32_0, %c0_i32_1 : i32, i32, i32
  }
  func.func @transform_2(%arg0: i32) -> (i32, i32, i32) {
    %c0_i32 = arith.constant 0 : i32
    %c0_i32_0 = arith.constant 0 : i32
    %c0_i32_1 = arith.constant 0 : i32
    %c0_i32_2 = arith.constant 0 : i32
    return %c0_i32, %c0_i32_0, %c0_i32_1 : i32, i32, i32
  }
  func.func @transform_3(%arg0: i32) -> (i32, i32) {
    %c0_i32 = arith.constant 0 : i32
    %c0_i32_0 = arith.constant 0 : i32
    %c0_i32_1 = arith.constant 0 : i32
    return %c0_i32, %c0_i32_0 : i32, i32
  }
  func.func @transform_4(%arg0: i32) -> (i32, i32, i32) {
    %c0_i32 = arith.constant 0 : i32
    %c0_i32_0 = arith.constant 0 : i32
    %c0_i32_1 = arith.constant 0 : i32
    %c0_i32_2 = arith.constant 0 : i32
    return %c0_i32, %c0_i32_0, %c0_i32_1 : i32, i32, i32
  }
  func.func @transform_5(%arg0: i32) -> (i32, i32, i32) {
    %c0_i32 = arith.constant 0 : i32
    %c0_i32_0 = arith.constant 0 : i32
    %c0_i32_1 = arith.constant 0 : i32
    %c0_i32_2 = arith.constant 0 : i32
    return %c0_i32, %c0_i32_0, %c0_i32_1 : i32, i32, i32
  }
  func.func @transform_6(%arg0: i32) -> (i32, i32) {
    %c0_i32 = arith.constant 0 : i32
    %c0_i32_0 = arith.constant 0 : i32
    %c0_i32_1 = arith.constant 0 : i32
    return %c0_i32, %c0_i32_0 : i32, i32
  }
  func.func @transform_7(%arg0: i32) -> (i32, i32, i32) {
    %c0_i32 = arith.constant 0 : i32
    %c0_i32_0 = arith.constant 0 : i32
    %c0_i32_1 = arith.constant 0 : i32
    %c0_i32_2 = arith.constant 0 : i32
    return %c0_i32, %c0_i32_0, %c0_i32_1 : i32, i32, i32
  }
  func.func @transform_8(%arg0: i32) -> (i32, i32, i32) {
    %c0_i32 = arith.constant 0 : i32
    %c0_i32_0 = arith.constant 0 : i32
    %c0_i32_1 = arith.constant 0 : i32
    %c0_i32_2 = arith.constant 0 : i32
    return %c0_i32, %c0_i32_0, %c0_i32_1 : i32, i32, i32
  }
  func.func @transform_9(%arg0: i32) -> (i32, i32) {
    %c0_i32 = arith.constant 0 : i32
    %c0_i32_0 = arith.constant 0 : i32
    %c0_i32_1 = arith.constant 0 : i32
    return %c0_i32, %c0_i32_0 : i32, i32
  }
  func.func @transform_10(%arg0: i32) -> (i32, i32) {
    %c0_i32 = arith.constant 0 : i32
    %c0_i32_0 = arith.constant 0 : i32
    %c0_i32_1 = arith.constant 0 : i32
    return %c0_i32, %c0_i32_0 : i32, i32
  }
  func.func @transform_11(%arg0: i32) -> (i32, i32) {
    %c0_i32 = arith.constant 0 : i32
    %c0_i32_0 = arith.constant 0 : i32
    %c0_i32_1 = arith.constant 0 : i32
    return %c0_i32, %c0_i32_0 : i32, i32
  }
  func.func @transform_12(%arg0: i32) -> (i32, i32) {
    %c0_i32 = arith.constant 0 : i32
    %c0_i32_0 = arith.constant 0 : i32
    %c0_i32_1 = arith.constant 0 : i32
    return %c0_i32, %c0_i32_0 : i32, i32
  }
  func.func @transform_13(%arg0: i32) -> (i32, i32) {
    %c0_i32 = arith.constant 0 : i32
    %c0_i32_0 = arith.constant 0 : i32
    %c0_i32_1 = arith.constant 0 : i32
    return %c0_i32, %c0_i32_0 : i32, i32
  }
  func.func @transform_14(%arg0: i32) -> (i32, i32) {
    %c0_i32 = arith.constant 0 : i32
    %c0_i32_0 = arith.constant 0 : i32
    %c0_i32_1 = arith.constant 0 : i32
    return %c0_i32, %c0_i32_0 : i32, i32
  }
  func.func @transform_15(%arg0: i32) -> (i32, i32) {
    %c0_i32 = arith.constant 0 : i32
    %c0_i32_0 = arith.constant 0 : i32
    %c0_i32_1 = arith.constant 0 : i32
    return %c0_i32, %c0_i32_0 : i32, i32
  }
  func.func @transform_16(%arg0: i32) -> (i32, i32) {
    %c0_i32 = arith.constant 0 : i32
    %c0_i32_0 = arith.constant 0 : i32
    %c0_i32_1 = arith.constant 0 : i32
    return %c0_i32, %c0_i32_0 : i32, i32
  }
  func.func @transform_17(%arg0: i32) -> (i32, i32) {
    %c0_i32 = arith.constant 0 : i32
    %c0_i32_0 = arith.constant 0 : i32
    %c0_i32_1 = arith.constant 0 : i32
    return %c0_i32, %c0_i32_0 : i32, i32
  }
  func.func @transform_18(%arg0: i32) -> (i32, i32, i32) {
    %c0_i32 = arith.constant 0 : i32
    %c0_i32_0 = arith.constant 0 : i32
    %c0_i32_1 = arith.constant 0 : i32
    return %arg0, %c0_i32, %c0_i32_0 : i32, i32, i32
  }
}

</mosaic_0001>

<llo_original>
// kernel: qnet_forward.1
$region0: #{qnet_forward.1}
  #allocation0 [shape = 'u32[]', space=smem, size = 0x4, offset = 0x4, fixed_abs, tag = 'smem constant byte address 0x4 - core index']
  #allocation1 [shape = 'u32[144,128]{1,0:T(1,128)}', space=vmem, size = 0x12000, scoped, tag = 'internal scratch']
  %s0 = inlined_call_operand.vmem [shape: f32[2,16,64], index: 0, kind: input, shape index: {}]
  %s1 = inlined_call_operand.vmem [shape: bf16[3,7,16], index: 1, kind: input, shape index: {}]
  %s2 = inlined_call_operand.vmem [shape: bf16[3,64,56], index: 2, kind: input, shape index: {}]
  %s3 = inlined_call_operand.vmem [shape: f32[1,56], index: 3, kind: input, shape index: {}]
  %s4 = inlined_call_operand.vmem [shape: bf16[3,3,7], index: 4, kind: input, shape index: {}]
  %s5 = inlined_call_operand.vmem [shape: bf16[3,56,36], index: 5, kind: input, shape index: {}]
  %s6 = inlined_call_operand.vmem [shape: f32[1,36], index: 6, kind: input, shape index: {}]
  %s7 = inlined_call_operand.vmem [shape: bf16[3,1,3], index: 7, kind: input, shape index: {}]
  %s8 = inlined_call_operand.vmem [shape: bf16[3,36,64], index: 8, kind: input, shape index: {}]
  %s9 = inlined_call_operand.vmem [shape: f32[1,64], index: 9, kind: input, shape index: {}]
  %s10 = inlined_call_operand.vmem [shape: bf16[64,64], index: 10, kind: input, shape index: {}]
  %s11 = inlined_call_operand.vmem [shape: f32[1,64], index: 11, kind: input, shape index: {}]
  %s12 = inlined_call_operand.vmem [shape: bf16[64,64], index: 12, kind: input, shape index: {}]
  %s13 = inlined_call_operand.vmem [shape: f32[1,64], index: 13, kind: input, shape index: {}]
  %s14 = inlined_call_operand.vmem [shape: bf16[64,128], index: 14, kind: input, shape index: {}]
  %s15 = inlined_call_operand.vmem [shape: f32[1,128], index: 15, kind: input, shape index: {}]
  %s16 = inlined_call_operand.vmem [shape: bf16[128,5], index: 16, kind: input, shape index: {}]
  %s17 = inlined_call_operand.vmem [shape: f32[1,5], index: 17, kind: input, shape index: {}]
  %s18 = inlined_call_operand.hbm [shape: f32[2,1,5], index: 18, kind: output, shape index: {}]
  %s19 = sld [smem:[#allocation0]]
  $region105: #{qnet_forward.1} parent=0
    _
  %s21 = ssub.s32 1, %s19
  %s22 = scalar_select 0, %s21, %s19
  $region1: #{qnet_forward.1} parent=0
    #allocation2 [shape = 'u8[1024]{0}', space=vmem, size = 0x400, scoped, tag = 'output window, operand 0']
    #allocation3 [shape = 's32[2]{0}', space=sflag, size = 0x8, scoped, tag = 'scoped memory for qnet_forward.1']
    %23 = vsyncpa [#allocation3], 0
    %s24 = scalar_lea.sflag [#allocation3], 1
    %25 = vsyncpa %s24, 0
    loop: start=0, step=1, limit=4
    $region2: #{qnet_forward.1} parent=1 // loop_pre_header
      _
    $region3: #{qnet_forward.1} parent=1 // loop_header
      %s27 = sphi 0, %s31
      %p28 = scmp.ge.s32.totalorder %s27, 4
      %s37 = sphi 0, %s39
      %s40 = sphi 0, %s37
      %s41 = sphi 0, %s40
      %s57 = sphi 0, %s41
      %s61 = sphi 0, %s61
      %s63 = sphi 0, %s61
      %s64 = sphi 0, %s63
      %s78 = sphi 0, %s64
      %s82 = sphi 0, %s82
      %s84 = sphi 0, %s82
      %s85 = sphi 0, %s84
      %s99 = sphi 0, %s85
      %s103 = sphi 0, %s103
      %s105 = sphi 0, %s103
      %s106 = sphi 0, %s105
      %s120 = sphi 0, %s106
      %s124 = sphi 0, %s124
      %s126 = sphi 0, %s124
      %s127 = sphi 0, %s126
      %s141 = sphi 0, %s127
      %s145 = sphi 0, %s145
      %s147 = sphi 0, %s145
      %s148 = sphi 0, %s147
      %s162 = sphi 0, %s148
      %s166 = sphi 0, %s166
      %s168 = sphi 0, %s166
      %s169 = sphi 0, %s168
      %s183 = sphi 0, %s169
      %s187 = sphi 0, %s187
      %s189 = sphi 0, %s187
      %s190 = sphi 0, %s189
      %s204 = sphi 0, %s190
      %s208 = sphi 0, %s208
      %s210 = sphi 0, %s208
      %s211 = sphi 0, %s210
      %s225 = sphi 0, %s211
      %s229 = sphi 0, %s229
      %s231 = sphi 0, %s229
      %s232 = sphi 0, %s231
      %s246 = sphi 0, %s232
      %s250 = sphi 0, %s250
      %s252 = sphi 0, %s250
      %s253 = sphi 0, %s252
      %s267 = sphi 0, %s253
      %s271 = sphi 0, %s271
      %s273 = sphi 0, %s271
      %s274 = sphi 0, %s273
      %s288 = sphi 0, %s274
      %s292 = sphi 0, %s292
      %s294 = sphi 0, %s292
      %s295 = sphi 0, %s294
      %s309 = sphi 0, %s295
      %s313 = sphi 0, %s313
      %s315 = sphi 0, %s313
      %s316 = sphi 0, %s315
      %s330 = sphi 0, %s316
      %s334 = sphi 0, %s334
      %s336 = sphi 0, %s334
      %s337 = sphi 0, %s336
      %s351 = sphi 0, %s337
      %s355 = sphi 0, %s355
      %s357 = sphi 0, %s355
      %s358 = sphi 0, %s357
      %s372 = sphi 0, %s358
      %s376 = sphi 0, %s376
      %s378 = sphi 0, %s376
      %s379 = sphi 0, %s378
      %s393 = sphi 0, %s379
      %s397 = sphi 0, %s397
      %s399 = sphi 0, %s397
      %s400 = sphi 0, %s399
      %s414 = sphi 0, %s400
      %s420 = sphi 0, %s422
      %s423 = sphi 0, %s420
      %s424 = sphi 0, %s423
      %s440 = sphi 0, %s424
    $region4: #{qnet_forward.1} parent=1 // loop_header_branch
      %30 = sbr.rel (%p28) target = $region8
    $region5: #{qnet_forward.1} parent=1 // loop_body
      %s32 = ssub.s32 %s27, 1
      %s33 = ssub.s32 %s27, 2
      %s34 = sadd.s32 %s27, 1
      %s35 = ssub.s32 %s27, %s34
      %p36 = scmp.eq.s32.totalorder %s35, 0
      %s38 = sadd.s32 %s37, 1
      %s39 = scalar_select %p36, %s37, %s38
      %p42 = pneg %p36
      %p43 = scmp.eq.s32.totalorder %s27, 1
      %p44 = por %p42, %p43
      %p45 = scmp.ne.s32.totalorder %s37, %s40
      %p46 = scmp.eq.s32.totalorder %s27, 0
      %p47 = por %p45, %p46
      %p48 = scmp.ne.s32.totalorder %s37, %s40
      %p49 = scmp.eq.s32.totalorder %s32, 1
      %p50 = por %p48, %p49
      %p51 = scmp.ne.s32.totalorder %s40, %s41
      %p52 = scmp.eq.s32.totalorder %s32, 0
      %p53 = por %p51, %p52
      %p54 = scmp.ne.s32.totalorder %s40, %s41
      %p55 = scmp.eq.s32.totalorder %s33, 1
      %p56 = por %p54, %p55
      %p58 = scmp.ne.s32.totalorder %s41, %s57
      %p59 = scmp.eq.s32.totalorder %s33, 0
      %p60 = por %p58, %p59
      %s62 = sadd.s32 %s61, 1
      %p65 = scmp.eq.s32.totalorder %s27, 1
      %p66 = scmp.ne.s32.totalorder %s61, %s63
      %p67 = scmp.eq.s32.totalorder %s27, 0
      %p68 = por %p66, %p67
      %p69 = scmp.ne.s32.totalorder %s61, %s63
      %p70 = scmp.eq.s32.totalorder %s32, 1
      %p71 = por %p69, %p70
      %p72 = scmp.ne.s32.totalorder %s63, %s64
      %p73 = scmp.eq.s32.totalorder %s32, 0
      %p74 = por %p72, %p73
      %p75 = scmp.ne.s32.totalorder %s63, %s64
      %p76 = scmp.eq.s32.totalorder %s33, 1
      %p77 = por %p75, %p76
      %p79 = scmp.ne.s32.totalorder %s64, %s78
      %p80 = scmp.eq.s32.totalorder %s33, 0
      %p81 = por %p79, %p80
      %s83 = sadd.s32 %s82, 1
      %p86 = scmp.eq.s32.totalorder %s27, 1
      %p87 = scmp.ne.s32.totalorder %s82, %s84
      %p88 = scmp.eq.s32.totalorder %s27, 0
      %p89 = por %p87, %p88
      %p90 = scmp.ne.s32.totalorder %s82, %s84
      %p91 = scmp.eq.s32.totalorder %s32, 1
      %p92 = por %p90, %p91
      %p93 = scmp.ne.s32.totalorder %s84, %s85
      %p94 = scmp.eq.s32.totalorder %s32, 0
      %p95 = por %p93, %p94
      %p96 = scmp.ne.s32.totalorder %s84, %s85
      %p97 = scmp.eq.s32.totalorder %s33, 1
      %p98 = por %p96, %p97
      %p100 = scmp.ne.s32.totalorder %s85, %s99
      %p101 = scmp.eq.s32.totalorder %s33, 0
      %p102 = por %p100, %p101
      %s104 = sadd.s32 %s103, 1
      %p107 = scmp.eq.s32.totalorder %s27, 1
      %p108 = scmp.ne.s32.totalorder %s103, %s105
      %p109 = scmp.eq.s32.totalorder %s27, 0
      %p110 = por %p108, %p109
      %p111 = scmp.ne.s32.totalorder %s103, %s105
      %p112 = scmp.eq.s32.totalorder %s32, 1
      %p113 = por %p111, %p112
      %p114 = scmp.ne.s32.totalorder %s105, %s106
      %p115 = scmp.eq.s32.totalorder %s32, 0
      %p116 = por %p114, %p115
      %p117 = scmp.ne.s32.totalorder %s105, %s106
      %p118 = scmp.eq.s32.totalorder %s33, 1
      %p119 = por %p117, %p118
      %p121 = scmp.ne.s32.totalorder %s106, %s120
      %p122 = scmp.eq.s32.totalorder %s33, 0
      %p123 = por %p121, %p122
      %s125 = sadd.s32 %s124, 1
      %p128 = scmp.eq.s32.totalorder %s27, 1
      %p129 = scmp.ne.s32.totalorder %s124, %s126
      %p130 = scmp.eq.s32.totalorder %s27, 0
      %p131 = por %p129, %p130
      %p132 = scmp.ne.s32.totalorder %s124, %s126
      %p133 = scmp.eq.s32.totalorder %s32, 1
      %p134 = por %p132, %p133
      %p135 = scmp.ne.s32.totalorder %s126, %s127
      %p136 = scmp.eq.s32.totalorder %s32, 0
      %p137 = por %p135, %p136
      %p138 = scmp.ne.s32.totalorder %s126, %s127
      %p139 = scmp.eq.s32.totalorder %s33, 1
      %p140 = por %p138, %p139
      %p142 = scmp.ne.s32.totalorder %s127, %s141
      %p143 = scmp.eq.s32.totalorder %s33, 0
      %p144 = por %p142, %p143
      %s146 = sadd.s32 %s145, 1
      %p149 = scmp.eq.s32.totalorder %s27, 1
      %p150 = scmp.ne.s32.totalorder %s145, %s147
      %p151 = scmp.eq.s32.totalorder %s27, 0
      %p152 = por %p150, %p151
      %p153 = scmp.ne.s32.totalorder %s145, %s147
      %p154 = scmp.eq.s32.totalorder %s32, 1
      %p155 = por %p153, %p154
      %p156 = scmp.ne.s32.totalorder %s147, %s148
      %p157 = scmp.eq.s32.totalorder %s32, 0
      %p158 = por %p156, %p157
      %p159 = scmp.ne.s32.totalorder %s147, %s148
      %p160 = scmp.eq.s32.totalorder %s33, 1
      %p161 = por %p159, %p160
      %p163 = scmp.ne.s32.totalorder %s148, %s162
      %p164 = scmp.eq.s32.totalorder %s33, 0
      %p165 = por %p163, %p164
      %s167 = sadd.s32 %s166, 1
      %p170 = scmp.eq.s32.totalorder %s27, 1
      %p171 = scmp.ne.s32.totalorder %s166, %s168
      %p172 = scmp.eq.s32.totalorder %s27, 0
      %p173 = por %p171, %p172
      %p174 = scmp.ne.s32.totalorder %s166, %s168
      %p175 = scmp.eq.s32.totalorder %s32, 1
      %p176 = por %p174, %p175
      %p177 = scmp.ne.s32.totalorder %s168, %s169
      %p178 = scmp.eq.s32.totalorder %s32, 0
      %p179 = por %p177, %p178
      %p180 = scmp.ne.s32.totalorder %s168, %s169
      %p181 = scmp.eq.s32.totalorder %s33, 1
      %p182 = por %p180, %p181
      %p184 = scmp.ne.s32.totalorder %s169, %s183
      %p185 = scmp.eq.s32.totalorder %s33, 0
      %p186 = por %p184, %p185
      %s188 = sadd.s32 %s187, 1
      %p191 = scmp.eq.s32.totalorder %s27, 1
      %p192 = scmp.ne.s32.totalorder %s187, %s189
      %p193 = scmp.eq.s32.totalorder %s27, 0
      %p194 = por %p192, %p193
      %p195 = scmp.ne.s32.totalorder %s187, %s189
      %p196 = scmp.eq.s32.totalorder %s32, 1
      %p197 = por %p195, %p196
      %p198 = scmp.ne.s32.totalorder %s189, %s190
      %p199 = scmp.eq.s32.totalorder %s32, 0
      %p200 = por %p198, %p199
      %p201 = scmp.ne.s32.totalorder %s189, %s190
      %p202 = scmp.eq.s32.totalorder %s33, 1
      %p203 = por %p201, %p202
      %p205 = scmp.ne.s32.totalorder %s190, %s204
      %p206 = scmp.eq.s32.totalorder %s33, 0
      %p207 = por %p205, %p206
      %s209 = sadd.s32 %s208, 1
      %p212 = scmp.eq.s32.totalorder %s27, 1
      %p213 = scmp.ne.s32.totalorder %s208, %s210
      %p214 = scmp.eq.s32.totalorder %s27, 0
      %p215 = por %p213, %p214
      %p216 = scmp.ne.s32.totalorder %s208, %s210
      %p217 = scmp.eq.s32.totalorder %s32, 1
      %p218 = por %p216, %p217
      %p219 = scmp.ne.s32.totalorder %s210, %s211
      %p220 = scmp.eq.s32.totalorder %s32, 0
      %p221 = por %p219, %p220
      %p222 = scmp.ne.s32.totalorder %s210, %s211
      %p223 = scmp.eq.s32.totalorder %s33, 1
      %p224 = por %p222, %p223
      %p226 = scmp.ne.s32.totalorder %s211, %s225
      %p227 = scmp.eq.s32.totalorder %s33, 0
      %p228 = por %p226, %p227
      %s230 = sadd.s32 %s229, 1
      %p233 = scmp.eq.s32.totalorder %s27, 1
      %p234 = scmp.ne.s32.totalorder %s229, %s231
      %p235 = scmp.eq.s32.totalorder %s27, 0
      %p236 = por %p234, %p235
      %p237 = scmp.ne.s32.totalorder %s229, %s231
      %p238 = scmp.eq.s32.totalorder %s32, 1
      %p239 = por %p237, %p238
      %p240 = scmp.ne.s32.totalorder %s231, %s232
      %p241 = scmp.eq.s32.totalorder %s32, 0
      %p242 = por %p240, %p241
      %p243 = scmp.ne.s32.totalorder %s231, %s232
      %p244 = scmp.eq.s32.totalorder %s33, 1
      %p245 = por %p243, %p244
      %p247 = scmp.ne.s32.totalorder %s232, %s246
      %p248 = scmp.eq.s32.totalorder %s33, 0
      %p249 = por %p247, %p248
      %s251 = sadd.s32 %s250, 1
      %p254 = scmp.eq.s32.totalorder %s27, 1
      %p255 = scmp.ne.s32.totalorder %s250, %s252
      %p256 = scmp.eq.s32.totalorder %s27, 0
      %p257 = por %p255, %p256
      %p258 = scmp.ne.s32.totalorder %s250, %s252
      %p259 = scmp.eq.s32.totalorder %s32, 1
      %p260 = por %p258, %p259
      %p261 = scmp.ne.s32.totalorder %s252, %s253
      %p262 = scmp.eq.s32.totalorder %s32, 0
      %p263 = por %p261, %p262
      %p264 = scmp.ne.s32.totalorder %s252, %s253
      %p265 = scmp.eq.s32.totalorder %s33, 1
      %p266 = por %p264, %p265
      %p268 = scmp.ne.s32.totalorder %s253, %s267
      %p269 = scmp.eq.s32.totalorder %s33, 0
      %p270 = por %p268, %p269
      %s272 = sadd.s32 %s271, 1
      %p275 = scmp.eq.s32.totalorder %s27, 1
      %p276 = scmp.ne.s32.totalorder %s271, %s273
      %p277 = scmp.eq.s32.totalorder %s27, 0
      %p278 = por %p276, %p277
      %p279 = scmp.ne.s32.totalorder %s271, %s273
      %p280 = scmp.eq.s32.totalorder %s32, 1
      %p281 = por %p279, %p280
      %p282 = scmp.ne.s32.totalorder %s273, %s274
      %p283 = scmp.eq.s32.totalorder %s32, 0
      %p284 = por %p282, %p283
      %p285 = scmp.ne.s32.totalorder %s273, %s274
      %p286 = scmp.eq.s32.totalorder %s33, 1
      %p287 = por %p285, %p286
      %p289 = scmp.ne.s32.totalorder %s274, %s288
      %p290 = scmp.eq.s32.totalorder %s33, 0
      %p291 = por %p289, %p290
      %s293 = sadd.s32 %s292, 1
      %p296 = scmp.eq.s32.totalorder %s27, 1
      %p297 = scmp.ne.s32.totalorder %s292, %s294
      %p298 = scmp.eq.s32.totalorder %s27, 0
      %p299 = por %p297, %p298
      %p300 = scmp.ne.s32.totalorder %s292, %s294
      %p301 = scmp.eq.s32.totalorder %s32, 1
      %p302 = por %p300, %p301
      %p303 = scmp.ne.s32.totalorder %s294, %s295
      %p304 = scmp.eq.s32.totalorder %s32, 0
      %p305 = por %p303, %p304
      %p306 = scmp.ne.s32.totalorder %s294, %s295
      %p307 = scmp.eq.s32.totalorder %s33, 1
      %p308 = por %p306, %p307
      %p310 = scmp.ne.s32.totalorder %s295, %s309
      %p311 = scmp.eq.s32.totalorder %s33, 0
      %p312 = por %p310, %p311
      %s314 = sadd.s32 %s313, 1
      %p317 = scmp.eq.s32.totalorder %s27, 1
      %p318 = scmp.ne.s32.totalorder %s313, %s315
      %p319 = scmp.eq.s32.totalorder %s27, 0
      %p320 = por %p318, %p319
      %p321 = scmp.ne.s32.totalorder %s313, %s315
      %p322 = scmp.eq.s32.totalorder %s32, 1
      %p323 = por %p321, %p322
      %p324 = scmp.ne.s32.totalorder %s315, %s316
      %p325 = scmp.eq.s32.totalorder %s32, 0
      %p326 = por %p324, %p325
      %p327 = scmp.ne.s32.totalorder %s315, %s316
      %p328 = scmp.eq.s32.totalorder %s33, 1
      %p329 = por %p327, %p328
      %p331 = scmp.ne.s32.totalorder %s316, %s330
      %p332 = scmp.eq.s32.totalorder %s33, 0
      %p333 = por %p331, %p332
      %s335 = sadd.s32 %s334, 1
      %p338 = scmp.eq.s32.totalorder %s27, 1
      %p339 = scmp.ne.s32.totalorder %s334, %s336
      %p340 = scmp.eq.s32.totalorder %s27, 0
      %p341 = por %p339, %p340
      %p342 = scmp.ne.s32.totalorder %s334, %s336
      %p343 = scmp.eq.s32.totalorder %s32, 1
      %p344 = por %p342, %p343
      %p345 = scmp.ne.s32.totalorder %s336, %s337
      %p346 = scmp.eq.s32.totalorder %s32, 0
      %p347 = por %p345, %p346
      %p348 = scmp.ne.s32.totalorder %s336, %s337
      %p349 = scmp.eq.s32.totalorder %s33, 1
      %p350 = por %p348, %p349
      %p352 = scmp.ne.s32.totalorder %s337, %s351
      %p353 = scmp.eq.s32.totalorder %s33, 0
      %p354 = por %p352, %p353
      %s356 = sadd.s32 %s355, 1
      %p359 = scmp.eq.s32.totalorder %s27, 1
      %p360 = scmp.ne.s32.totalorder %s355, %s357
      %p361 = scmp.eq.s32.totalorder %s27, 0
      %p362 = por %p360, %p361
      %p363 = scmp.ne.s32.totalorder %s355, %s357
      %p364 = scmp.eq.s32.totalorder %s32, 1
      %p365 = por %p363, %p364
      %p366 = scmp.ne.s32.totalorder %s357, %s358
      %p367 = scmp.eq.s32.totalorder %s32, 0
      %p368 = por %p366, %p367
      %p369 = scmp.ne.s32.totalorder %s357, %s358
      %p370 = scmp.eq.s32.totalorder %s33, 1
      %p371 = por %p369, %p370
      %p373 = scmp.ne.s32.totalorder %s358, %s372
      %p374 = scmp.eq.s32.totalorder %s33, 0
      %p375 = por %p373, %p374
      %s377 = sadd.s32 %s376, 1
      %p380 = scmp.eq.s32.totalorder %s27, 1
      %p381 = scmp.ne.s32.totalorder %s376, %s378
      %p382 = scmp.eq.s32.totalorder %s27, 0
      %p383 = por %p381, %p382
      %p384 = scmp.ne.s32.totalorder %s376, %s378
      %p385 = scmp.eq.s32.totalorder %s32, 1
      %p386 = por %p384, %p385
      %p387 = scmp.ne.s32.totalorder %s378, %s379
      %p388 = scmp.eq.s32.totalorder %s32, 0
      %p389 = por %p387, %p388
      %p390 = scmp.ne.s32.totalorder %s378, %s379
      %p391 = scmp.eq.s32.totalorder %s33, 1
      %p392 = por %p390, %p391
      %p394 = scmp.ne.s32.totalorder %s379, %s393
      %p395 = scmp.eq.s32.totalorder %s33, 0
      %p396 = por %p394, %p395
      %s398 = sadd.s32 %s397, 1
      %p401 = scmp.eq.s32.totalorder %s27, 1
      %p402 = scmp.ne.s32.totalorder %s397, %s399
      %p403 = scmp.eq.s32.totalorder %s27, 0
      %p404 = por %p402, %p403
      %p405 = scmp.ne.s32.totalorder %s397, %s399
      %p406 = scmp.eq.s32.totalorder %s32, 1
      %p407 = por %p405, %p406
      %p408 = scmp.ne.s32.totalorder %s399, %s400
      %p409 = scmp.eq.s32.totalorder %s32, 0
      %p410 = por %p408, %p409
      %p411 = scmp.ne.s32.totalorder %s399, %s400
      %p412 = scmp.eq.s32.totalorder %s33, 1
      %p413 = por %p411, %p412
      %p415 = scmp.ne.s32.totalorder %s400, %s414
      %p416 = scmp.eq.s32.totalorder %s33, 0
      %p417 = por %p415, %p416
      %s418 = ssub.s32 %s27, %s34
      %p419 = scmp.eq.s32.totalorder %s418, 0
      %s421 = sadd.s32 %s420, 1
      %s422 = scalar_select %p419, %s420, %s421
      %p425 = pneg %p419
      %p426 = scmp.eq.s32.totalorder %s27, 1
      %p427 = por %p425, %p426
      %p428 = scmp.ne.s32.totalorder %s420, %s423
      %p429 = scmp.eq.s32.totalorder %s27, 0
      %p430 = por %p428, %p429
      %p431 = scmp.ne.s32.totalorder %s420, %s423
      %p432 = scmp.eq.s32.totalorder %s32, 1
      %p433 = por %p431, %p432
      %p434 = scmp.ne.s32.totalorder %s423, %s424
      %p435 = scmp.eq.s32.totalorder %s32, 0
      %p436 = por %p434, %p435
      %p437 = scmp.ne.s32.totalorder %s423, %s424
      %p438 = scmp.eq.s32.totalorder %s33, 1
      %p439 = por %p437, %p438
      %p441 = scmp.ne.s32.totalorder %s424, %s440
      %p442 = scmp.eq.s32.totalorder %s33, 0
      %p443 = por %p441, %p442
      %p444 = scmp.le.s32.totalorder 1, %s27
      %p445 = scmp.lt.s32.totalorder %s27, 3
      %p446 = pnand %p444, %p445
      %p447 = pneg %p446
      // Predicated region
      $region9: #{qnet_forward.1} parent=5 // pred_check
        _
      $region10: #{qnet_forward.1} parent=5 // pred_check_branch
        %449 = sbr.rel (%p446) target = $region12
      $region11: #{qnet_forward.1} parent=5 // pred_region
        %s450 = ssub.s32 %s27, 1
        // Predicated region
        $region13: #{qnet_forward.1} parent=11 // pred_check
          %p451 = pneg %p74
        $region14: #{qnet_forward.1} parent=11 // pred_check_branch
          %453 = sbr.rel (%p451) target = $region16
        $region15: #{qnet_forward.1} parent=11 // pred_region
          _
        $region16: #{qnet_forward.1} parent=11 // pred_fallthru
          _
        // Predicated region
        $region17: #{qnet_forward.1} parent=11 // pred_check
          %p454 = pneg %p95
        $region18: #{qnet_forward.1} parent=11 // pred_check_branch
          %456 = sbr.rel (%p454) target = $region20
        $region19: #{qnet_forward.1} parent=11 // pred_region
          _
        $region20: #{qnet_forward.1} parent=11 // pred_fallthru
          _
        // Predicated region
        $region21: #{qnet_forward.1} parent=11 // pred_check
          %p457 = pneg %p116
        $region22: #{qnet_forward.1} parent=11 // pred_check_branch
          %459 = sbr.rel (%p457) target = $region24
        $region23: #{qnet_forward.1} parent=11 // pred_region
          _
        $region24: #{qnet_forward.1} parent=11 // pred_fallthru
          _
        // Predicated region
        $region25: #{qnet_forward.1} parent=11 // pred_check
          %p460 = pneg %p137
        $region26: #{qnet_forward.1} parent=11 // pred_check_branch
          %462 = sbr.rel (%p460) target = $region28
        $region27: #{qnet_forward.1} parent=11 // pred_region
          _
        $region28: #{qnet_forward.1} parent=11 // pred_fallthru
          _
        // Predicated region
        $region29: #{qnet_forward.1} parent=11 // pred_check
          %p463 = pneg %p158
        $region30: #{qnet_forward.1} parent=11 // pred_check_branch
          %465 = sbr.rel (%p463) target = $region32
        $region31: #{qnet_forward.1} parent=11 // pred_region
          _
        $region32: #{qnet_forward.1} parent=11 // pred_fallthru
          _
        // Predicated region
        $region33: #{qnet_forward.1} parent=11 // pred_check
          %p466 = pneg %p179
        $region34: #{qnet_forward.1} parent=11 // pred_check_branch
          %468 = sbr.rel (%p466) target = $region36
        $region35: #{qnet_forward.1} parent=11 // pred_region
          _
        $region36: #{qnet_forward.1} parent=11 // pred_fallthru
          _
        // Predicated region
        $region37: #{qnet_forward.1} parent=11 // pred_check
          %p469 = pneg %p200
        $region38: #{qnet_forward.1} parent=11 // pred_check_branch
          %471 = sbr.rel (%p469) target = $region40
        $region39: #{qnet_forward.1} parent=11 // pred_region
          _
        $region40: #{qnet_forward.1} parent=11 // pred_fallthru
          _
        // Predicated region
        $region41: #{qnet_forward.1} parent=11 // pred_check
          %p472 = pneg %p221
        $region42: #{qnet_forward.1} parent=11 // pred_check_branch
          %474 = sbr.rel (%p472) target = $region44
        $region43: #{qnet_forward.1} parent=11 // pred_region
          _
        $region44: #{qnet_forward.1} parent=11 // pred_fallthru
          _
        // Predicated region
        $region45: #{qnet_forward.1} parent=11 // pred_check
          %p475 = pneg %p242
        $region46: #{qnet_forward.1} parent=11 // pred_check_branch
          %477 = sbr.rel (%p475) target = $region48
        $region47: #{qnet_forward.1} parent=11 // pred_region
          _
        $region48: #{qnet_forward.1} parent=11 // pred_fallthru
          _
        // Predicated region
        $region49: #{qnet_forward.1} parent=11 // pred_check
          %p478 = pneg %p263
        $region50: #{qnet_forward.1} parent=11 // pred_check_branch
          %480 = sbr.rel (%p478) target = $region52
        $region51: #{qnet_forward.1} parent=11 // pred_region
          _
        $region52: #{qnet_forward.1} parent=11 // pred_fallthru
          _
        // Predicated region
        $region53: #{qnet_forward.1} parent=11 // pred_check
          %p481 = pneg %p284
        $region54: #{qnet_forward.1} parent=11 // pred_check_branch
          %483 = sbr.rel (%p481) target = $region56
        $region55: #{qnet_forward.1} parent=11 // pred_region
          _
        $region56: #{qnet_forward.1} parent=11 // pred_fallthru
          _
        // Predicated region
        $region57: #{qnet_forward.1} parent=11 // pred_check
          %p484 = pneg %p305
        $region58: #{qnet_forward.1} parent=11 // pred_check_branch
          %486 = sbr.rel (%p484) target = $region60
        $region59: #{qnet_forward.1} parent=11 // pred_region
          _
        $region60: #{qnet_forward.1} parent=11 // pred_fallthru
          _
        // Predicated region
        $region61: #{qnet_forward.1} parent=11 // pred_check
          %p487 = pneg %p326
        $region62: #{qnet_forward.1} parent=11 // pred_check_branch
          %489 = sbr.rel (%p487) target = $region64
        $region63: #{qnet_forward.1} parent=11 // pred_region
          _
        $region64: #{qnet_forward.1} parent=11 // pred_fallthru
          _
        // Predicated region
        $region65: #{qnet_forward.1} parent=11 // pred_check
          %p490 = pneg %p347
        $region66: #{qnet_forward.1} parent=11 // pred_check_branch
          %492 = sbr.rel (%p490) target = $region68
        $region67: #{qnet_forward.1} parent=11 // pred_region
          _
        $region68: #{qnet_forward.1} parent=11 // pred_fallthru
          _
        // Predicated region
        $region69: #{qnet_forward.1} parent=11 // pred_check
          %p493 = pneg %p368
        $region70: #{qnet_forward.1} parent=11 // pred_check_branch
          %495 = sbr.rel (%p493) target = $region72
        $region71: #{qnet_forward.1} parent=11 // pred_region
          _
        $region72: #{qnet_forward.1} parent=11 // pred_fallthru
          _
        // Predicated region
        $region73: #{qnet_forward.1} parent=11 // pred_check
          %p496 = pneg %p389
        $region74: #{qnet_forward.1} parent=11 // pred_check_branch
          %498 = sbr.rel (%p496) target = $region76
        $region75: #{qnet_forward.1} parent=11 // pred_region
          _
        $region76: #{qnet_forward.1} parent=11 // pred_fallthru
          _
        // Predicated region
        $region77: #{qnet_forward.1} parent=11 // pred_check
          %p499 = pneg %p410
        $region78: #{qnet_forward.1} parent=11 // pred_check_branch
          %501 = sbr.rel (%p499) target = $region80
        $region79: #{qnet_forward.1} parent=11 // pred_region
          _
        $region80: #{qnet_forward.1} parent=11 // pred_fallthru
          _
      $region12: #{qnet_forward.1} parent=5 // pred_fallthru
        _
      %p502 = scmp.lt.s32.totalorder %s27, 2
      // Predicated region
      $region81: #{qnet_forward.1} parent=5 // pred_check
        %p503 = pneg %p502
      $region82: #{qnet_forward.1} parent=5 // pred_check_branch
        %505 = sbr.rel (%p503) target = $region84
      $region83: #{qnet_forward.1} parent=5 // pred_region
        // Predicated region
        $region85: #{qnet_forward.1} parent=83 // pred_check
          %p506 = pneg %p47
        $region86: #{qnet_forward.1} parent=83 // pred_check_branch
          %508 = sbr.rel (%p506) target = $region88
        $region87: #{qnet_forward.1} parent=83 // pred_region
          %p509 = scmp.lt.s32.totalorder %s27, 1
          %s510 = scalar_select %p509, %s27, 1
          %s511 = smul.addr %s510, 2
          %s512 = smul.addr %s511, 8
          %s513 = scalar_lea.vmem %s0, %s512
        $region88: #{qnet_forward.1} parent=83 // pred_fallthru
          _
      $region84: #{qnet_forward.1} parent=5 // pred_fallthru
        _
      %p514 = scmp.le.s32.totalorder 1, %s27
      %p515 = scmp.lt.s32.totalorder %s27, 3
      %p516 = pnand %p514, %p515
      %p517 = pneg %p516
      // Predicated region
      $region89: #{qnet_forward.1} parent=5 // pred_check
        _
      $region90: #{qnet_forward.1} parent=5 // pred_check_branch
        %519 = sbr.rel (%p516) target = $region92
      $region91: #{qnet_forward.1} parent=5 // pred_region
        %s520 = ssub.s32 %s27, 1
        %p521 = scmp.lt.s32.totalorder %s32, 1
        %s522 = scalar_select %p521, %s32, 1
        %s523 = smul.addr %s522, 2
        %s524 = smul.addr %s523, 8
        %s525 = scalar_lea.vmem %s0, %s524
        %p526 = pneg %p53
        %p527 = pneg %p50
        %p528 = pneg %p74
        %p529 = pneg %p71
        %p530 = pneg %p95
        %p531 = pneg %p92
        %p532 = pneg %p116
        %p533 = pneg %p113
        %p534 = pneg %p137
        %p535 = pneg %p134
        %p536 = pneg %p158
        %p537 = pneg %p155
        %p538 = pneg %p179
        %p539 = pneg %p176
        %p540 = pneg %p200
        %p541 = pneg %p197
        %p542 = pneg %p221
        %p543 = pneg %p218
        %p544 = pneg %p242
        %p545 = pneg %p239
        %p546 = pneg %p263
        %p547 = pneg %p260
        %p548 = pneg %p284
        %p549 = pneg %p281
        %p550 = pneg %p305
        %p551 = pneg %p302
        %p552 = pneg %p326
        %p553 = pneg %p323
        %p554 = pneg %p347
        %p555 = pneg %p344
        %p556 = pneg %p368
        %p557 = pneg %p365
        %p558 = pneg %p389
        %p559 = pneg %p386
        %p560 = pneg %p410
        %p561 = pneg %p407
        %p562 = pneg %p436
        %p563 = pneg %p433
        %s564 = sand.u32 %s423, 1
        %s565 = scalar_lea.sflag [#allocation3], %s564
        %s566 = sand.u32 %s423, 1
        %s567 = scalar_lea.vmem [#allocation2], %s566
        %p568 = scmp.lt.s32.totalorder %s32, 1
        %s569 = scalar_select %p568, %s32, 1
        %s570 = smul.addr %s569, 2
        %s571 = smul.addr %s570, 8
        %s572 = scalar_lea.vmem %s0, %s571
        %v574 = vld [vmem:[%s572] sm:$0xff]
        %v575 = vld [vmem:[%s572 + $0x8] sm:$0xff]
        %v576 = vpack.c.bf16 %v575, %v574
        %v577 = vld [vmem:[%s1] sm:$0xf]
        %vm578 = vcmask 130048
        %v580 = vsel %vm578, %v577, 0
        %582 = vmatprep.subr.bf16.mxu0 0
        %583 = vmatpush1.bf16.msra.mxu0 %v576
        %584 = vmatprep.subr.bf16.mxu0 0
        %585 = vmatpush1.bf16.msra.mxu0 0
        %586 = vmatprep.subr.bf16.mxu0 0
        %587 = vmatpush1.bf16.msra.mxu0 0
        %588 = vmatprep.subr.bf16.mxu0 0
        %589 = vmatpush1.bf16.msra.mxu0 0
        %590 = vmatprep.subr.bf16.mxu0 0
        %591 = vmatpush1.bf16.msra.mxu0 0
        %592 = vmatprep.subr.bf16.mxu0 0
        %593 = vmatpush1.bf16.msra.mxu0 0
        %594 = vmatprep.subr.bf16.mxu0 0
        %595 = vmatpush1.bf16.msra.mxu0 0
        %596 = vmatprep.subr.bf16.mxu0 0
        %597 = vmatpush1.bf16.msra.mxu0 0
        %598 = vmatprep.subr.bf16.mxu0 0
        %599 = vmatpush1.bf16.msra.mxu0 0
        %600 = vmatprep.subr.bf16.mxu0 0
        %601 = vmatpush1.bf16.msra.mxu0 0
        %602 = vmatprep.subr.bf16.mxu0 0
        %603 = vmatpush1.bf16.msra.mxu0 0
        %604 = vmatprep.subr.bf16.mxu0 0
        %605 = vmatpush1.bf16.msra.mxu0 0
        %606 = vmatprep.subr.bf16.mxu0 0
        %607 = vmatpush1.bf16.msra.mxu0 0
        %608 = vmatprep.subr.bf16.mxu0 0
        %609 = vmatpush1.bf16.msra.mxu0 0
        %610 = vmatprep.subr.bf16.mxu0 0
        %611 = vmatpush1.bf16.msra.mxu0 0
        %612 = vmatprep.subr.bf16.mxu0 0
        %613 = vmatpush1.bf16.msra.mxu0 0
        %614 = vmatprep.mubr.bf16.mxu0 0
        %615 = vmatmul.mubr.bf16.gmra.mrb[0].mxu0 %v580
        %v616 = vpop.f32.mrb[0].mxu0
        %v617 = vadd.f32 0.0, %v616
        %v618 = vpop.f32.mrb[0].mxu0
        %v619 = vpop.f32.mrb[0].mxu0
        %v620 = vpop.f32.mrb[0].mxu0
        %621 = vdwg.mxu0
        %v622 = vpack.c.bf16 %v617, %v617
        %v623 = vld [vmem:[%s2] sm:$0xf]
        %v624 = vld [vmem:[%s2 + $0x4] sm:$0xf]
        %v625 = vld [vmem:[%s2 + $0x8] sm:$0xf]
        %v626 = vld [vmem:[%s2 + $0xc] sm:$0xf]
        %v627 = vld [vmem:[%s2 + $0x10] sm:$0xf]
        %v628 = vld [vmem:[%s2 + $0x14] sm:$0xf]
        %v629 = vld [vmem:[%s2 + $0x18] sm:$0xf]
        %v630 = vld [vmem:[%s2 + $0x1c] sm:$0xf]
        %s631 = scalar_lea.vmem %s1, 4
        %v632 = vld [vmem:[%s631] sm:$0xf]
        %v634 = vsel %vm578, %v632, 0
        %636 = vmatprep.subr.bf16.mxu0 0
        %637 = vmatpush1.bf16.msra.mxu0 %v576
        %638 = vmatprep.subr.bf16.mxu0 0
        %639 = vmatpush1.bf16.msra.mxu0 0
        %640 = vmatprep.subr.bf16.mxu0 0
        %641 = vmatpush1.bf16.msra.mxu0 0
        %642 = vmatprep.subr.bf16.mxu0 0
        %643 = vmatpush1.bf16.msra.mxu0 0
        %644 = vmatprep.subr.bf16.mxu0 0
        %645 = vmatpush1.bf16.msra.mxu0 0
        %646 = vmatprep.subr.bf16.mxu0 0
        %647 = vmatpush1.bf16.msra.mxu0 0
        %648 = vmatprep.subr.bf16.mxu0 0
        %649 = vmatpush1.bf16.msra.mxu0 0
        %650 = vmatprep.subr.bf16.mxu0 0
        %651 = vmatpush1.bf16.msra.mxu0 0
        %652 = vmatprep.subr.bf16.mxu0 0
        %653 = vmatpush1.bf16.msra.mxu0 0
        %654 = vmatprep.subr.bf16.mxu0 0
        %655 = vmatpush1.bf16.msra.mxu0 0
        %656 = vmatprep.subr.bf16.mxu0 0
        %657 = vmatpush1.bf16.msra.mxu0 0
        %658 = vmatprep.subr.bf16.mxu0 0
        %659 = vmatpush1.bf16.msra.mxu0 0
        %660 = vmatprep.subr.bf16.mxu0 0
        %661 = vmatpush1.bf16.msra.mxu0 0
        %662 = vmatprep.subr.bf16.mxu0 0
        %663 = vmatpush1.bf16.msra.mxu0 0
        %664 = vmatprep.subr.bf16.mxu0 0
        %665 = vmatpush1.bf16.msra.mxu0 0
        %666 = vmatprep.subr.bf16.mxu0 0
        %667 = vmatpush1.bf16.msra.mxu0 0
        %668 = vmatprep.mubr.bf16.mxu0 0
        %669 = vmatmul.mubr.bf16.gmra.mrb[0].mxu0 %v634
        %v670 = vpop.f32.mrb[0].mxu0
        %v671 = vadd.f32 0.0, %v670
        %v672 = vpop.f32.mrb[0].mxu0
        %v673 = vpop.f32.mrb[0].mxu0
        %v674 = vpop.f32.mrb[0].mxu0
        %675 = vdwg.mxu0
        %v676 = vpack.c.bf16 %v671, %v671
        %s677 = scalar_lea.vmem %s2, 32
        %v678 = vld [vmem:[%s677] sm:$0xf]
        %v679 = vld [vmem:[%s677 + $0x4] sm:$0xf]
        %v680 = vld [vmem:[%s677 + $0x8] sm:$0xf]
        %v681 = vld [vmem:[%s677 + $0xc] sm:$0xf]
        %v682 = vld [vmem:[%s677 + $0x10] sm:$0xf]
        %v683 = vld [vmem:[%s677 + $0x14] sm:$0xf]
        %v684 = vld [vmem:[%s677 + $0x18] sm:$0xf]
        %v685 = vld [vmem:[%s677 + $0x1c] sm:$0xf]
        %v694 = vunpack.c.l.b16 %v678
        %v695 = vunpack.c.l.b16 %v679
        %v696 = vunpack.c.l.b16 %v680
        %v697 = vunpack.c.l.b16 %v681
        %v698 = vunpack.c.l.b16 %v682
        %v699 = vunpack.c.l.b16 %v683
        %v700 = vunpack.c.l.b16 %v684
        %v701 = vunpack.c.l.b16 %v685
        %v702 = vpack.c.b16 %v695, %v694
        %v703 = vpack.c.b16 %v697, %v696
        %v704 = vpack.c.b16 %v699, %v698
        %v705 = vpack.c.b16 %v701, %v700
        %vm710 = vcmask 523264
        %v712 = vsel %vm710, %v676, 0
        %714 = vmatprep.subr.bf16.mxu0 0
        %715 = vmatpush1.bf16.msra.mxu0 %v702
        %716 = vmatprep.subr.bf16.mxu0 0
        %717 = vmatpush1.bf16.msra.mxu0 %v703
        %718 = vmatprep.subr.bf16.mxu0 0
        %719 = vmatpush1.bf16.msra.mxu0 %v704
        %720 = vmatprep.subr.bf16.mxu0 0
        %721 = vmatpush1.bf16.msra.mxu0 %v705
        %722 = vmatprep.subr.bf16.mxu0 0
        %723 = vmatpush1.bf16.msra.mxu0 0
        %724 = vmatprep.subr.bf16.mxu0 0
        %725 = vmatpush1.bf16.msra.mxu0 0
        %726 = vmatprep.subr.bf16.mxu0 0
        %727 = vmatpush1.bf16.msra.mxu0 0
        %728 = vmatprep.subr.bf16.mxu0 0
        %729 = vmatpush1.bf16.msra.mxu0 0
        %730 = vmatprep.subr.bf16.mxu0 0
        %731 = vmatpush1.bf16.msra.mxu0 0
        %732 = vmatprep.subr.bf16.mxu0 0
        %733 = vmatpush1.bf16.msra.mxu0 0
        %734 = vmatprep.subr.bf16.mxu0 0
        %735 = vmatpush1.bf16.msra.mxu0 0
        %736 = vmatprep.subr.bf16.mxu0 0
        %737 = vmatpush1.bf16.msra.mxu0 0
        %738 = vmatprep.subr.bf16.mxu0 0
        %739 = vmatpush1.bf16.msra.mxu0 0
        %740 = vmatprep.subr.bf16.mxu0 0
        %741 = vmatpush1.bf16.msra.mxu0 0
        %742 = vmatprep.subr.bf16.mxu0 0
        %743 = vmatpush1.bf16.msra.mxu0 0
        %744 = vmatprep.subr.bf16.mxu0 0
        %745 = vmatpush1.bf16.msra.mxu0 0
        %746 = vmatprep.mubr.bf16.mxu0 0
        %747 = vmatmul.mubr.bf16.gmra.mrb[0].mxu0 %v712
        %v748 = vpop.f32.mrb[0].mxu0
        %v749 = vadd.f32 0.0, %v748
        %v750 = vpop.f32.mrb[0].mxu0
        %v751 = vpop.f32.mrb[0].mxu0
        %v752 = vpop.f32.mrb[0].mxu0
        %753 = vdwg.mxu0
        %v762 = vunpack.c.l.b16 %v623
        %v763 = vunpack.c.l.b16 %v624
        %v764 = vunpack.c.l.b16 %v625
        %v765 = vunpack.c.l.b16 %v626
        %v766 = vunpack.c.l.b16 %v627
        %v767 = vunpack.c.l.b16 %v628
        %v768 = vunpack.c.l.b16 %v629
        %v769 = vunpack.c.l.b16 %v630
        %v770 = vpack.c.b16 %v763, %v762
        %v771 = vpack.c.b16 %v765, %v764
        %v772 = vpack.c.b16 %v767, %v766
        %v773 = vpack.c.b16 %v769, %v768
        %v779 = vsel %vm710, %v622, 0
        %781 = vmatprep.subr.bf16.mxu0 0
        %782 = vmatpush1.bf16.msra.mxu0 %v770
        %783 = vmatprep.subr.bf16.mxu0 0
        %784 = vmatpush1.bf16.msra.mxu0 %v771
        %785 = vmatprep.subr.bf16.mxu0 0
        %786 = vmatpush1.bf16.msra.mxu0 %v772
        %787 = vmatprep.subr.bf16.mxu0 0
        %788 = vmatpush1.bf16.msra.mxu0 %v773
        %789 = vmatprep.subr.bf16.mxu0 0
        %790 = vmatpush1.bf16.msra.mxu0 0
        %791 = vmatprep.subr.bf16.mxu0 0
        %792 = vmatpush1.bf16.msra.mxu0 0
        %793 = vmatprep.subr.bf16.mxu0 0
        %794 = vmatpush1.bf16.msra.mxu0 0
        %795 = vmatprep.subr.bf16.mxu0 0
        %796 = vmatpush1.bf16.msra.mxu0 0
        %797 = vmatprep.subr.bf16.mxu0 0
        %798 = vmatpush1.bf16.msra.mxu0 0
        %799 = vmatprep.subr.bf16.mxu0 0
        %800 = vmatpush1.bf16.msra.mxu0 0
        %801 = vmatprep.subr.bf16.mxu0 0
        %802 = vmatpush1.bf16.msra.mxu0 0
        %803 = vmatprep.subr.bf16.mxu0 0
        %804 = vmatpush1.bf16.msra.mxu0 0
        %805 = vmatprep.subr.bf16.mxu0 0
        %806 = vmatpush1.bf16.msra.mxu0 0
        %807 = vmatprep.subr.bf16.mxu0 0
        %808 = vmatpush1.bf16.msra.mxu0 0
        %809 = vmatprep.subr.bf16.mxu0 0
        %810 = vmatpush1.bf16.msra.mxu0 0
        %811 = vmatprep.subr.bf16.mxu0 0
        %812 = vmatpush1.bf16.msra.mxu0 0
        %813 = vmatprep.mubr.bf16.mxu0 0
        %814 = vmatmul.mubr.bf16.gmra.mrb[0].mxu0 %v779
        %v815 = vpop.f32.mrb[0].mxu0
        %v816 = vadd.f32 %v749, %v815
        %v817 = vpop.f32.mrb[0].mxu0
        %v818 = vpop.f32.mrb[0].mxu0
        %v819 = vpop.f32.mrb[0].mxu0
        %820 = vdwg.mxu0
        %s821 = scalar_lea.vmem %s1, 8
        %v822 = vld [vmem:[%s821] sm:$0xf]
        %v824 = vsel %vm578, %v822, 0
        %826 = vmatprep.subr.bf16.mxu0 0
        %827 = vmatpush1.bf16.msra.mxu0 %v576
        %828 = vmatprep.subr.bf16.mxu0 0
        %829 = vmatpush1.bf16.msra.mxu0 0
        %830 = vmatprep.subr.bf16.mxu0 0
        %831 = vmatpush1.bf16.msra.mxu0 0
        %832 = vmatprep.subr.bf16.mxu0 0
        %833 = vmatpush1.bf16.msra.mxu0 0
        %834 = vmatprep.subr.bf16.mxu0 0
        %835 = vmatpush1.bf16.msra.mxu0 0
        %836 = vmatprep.subr.bf16.mxu0 0
        %837 = vmatpush1.bf16.msra.mxu0 0
        %838 = vmatprep.subr.bf16.mxu0 0
        %839 = vmatpush1.bf16.msra.mxu0 0
        %840 = vmatprep.subr.bf16.mxu0 0
        %841 = vmatpush1.bf16.msra.mxu0 0
        %842 = vmatprep.subr.bf16.mxu0 0
        %843 = vmatpush1.bf16.msra.mxu0 0
        %844 = vmatprep.subr.bf16.mxu0 0
        %845 = vmatpush1.bf16.msra.mxu0 0
        %846 = vmatprep.subr.bf16.mxu0 0
        %847 = vmatpush1.bf16.msra.mxu0 0
        %848 = vmatprep.subr.bf16.mxu0 0
        %849 = vmatpush1.bf16.msra.mxu0 0
        %850 = vmatprep.subr.bf16.mxu0 0
        %851 = vmatpush1.bf16.msra.mxu0 0
        %852 = vmatprep.subr.bf16.mxu0 0
        %853 = vmatpush1.bf16.msra.mxu0 0
        %854 = vmatprep.subr.bf16.mxu0 0
        %855 = vmatpush1.bf16.msra.mxu0 0
        %856 = vmatprep.subr.bf16.mxu0 0
        %857 = vmatpush1.bf16.msra.mxu0 0
        %858 = vmatprep.mubr.bf16.mxu0 0
        %859 = vmatmul.mubr.bf16.gmra.mrb[0].mxu0 %v824
        %v860 = vpop.f32.mrb[0].mxu0
        %v861 = vadd.f32 0.0, %v860
        %v862 = vpop.f32.mrb[0].mxu0
        %v863 = vpop.f32.mrb[0].mxu0
        %v864 = vpop.f32.mrb[0].mxu0
        %865 = vdwg.mxu0
        %v866 = vpack.c.bf16 %v861, %v861
        %s867 = scalar_lea.vmem %s2, 64
        %v868 = vld [vmem:[%s867] sm:$0xf]
        %v869 = vld [vmem:[%s867 + $0x4] sm:$0xf]
        %v870 = vld [vmem:[%s867 + $0x8] sm:$0xf]
        %v871 = vld [vmem:[%s867 + $0xc] sm:$0xf]
        %v872 = vld [vmem:[%s867 + $0x10] sm:$0xf]
        %v873 = vld [vmem:[%s867 + $0x14] sm:$0xf]
        %v874 = vld [vmem:[%s867 + $0x18] sm:$0xf]
        %v875 = vld [vmem:[%s867 + $0x1c] sm:$0xf]
        %v884 = vunpack.c.l.b16 %v868
        %v885 = vunpack.c.l.b16 %v869
        %v886 = vunpack.c.l.b16 %v870
        %v887 = vunpack.c.l.b16 %v871
        %v888 = vunpack.c.l.b16 %v872
        %v889 = vunpack.c.l.b16 %v873
        %v890 = vunpack.c.l.b16 %v874
        %v891 = vunpack.c.l.b16 %v875
        %v892 = vpack.c.b16 %v885, %v884
        %v893 = vpack.c.b16 %v887, %v886
        %v894 = vpack.c.b16 %v889, %v888
        %v895 = vpack.c.b16 %v891, %v890
        %v901 = vsel %vm710, %v866, 0
        %903 = vmatprep.subr.bf16.mxu0 0
        %904 = vmatpush1.bf16.msra.mxu0 %v892
        %905 = vmatprep.subr.bf16.mxu0 0
        %906 = vmatpush1.bf16.msra.mxu0 %v893
        %907 = vmatprep.subr.bf16.mxu0 0
        %908 = vmatpush1.bf16.msra.mxu0 %v894
        %909 = vmatprep.subr.bf16.mxu0 0
        %910 = vmatpush1.bf16.msra.mxu0 %v895
        %911 = vmatprep.subr.bf16.mxu0 0
        %912 = vmatpush1.bf16.msra.mxu0 0
        %913 = vmatprep.subr.bf16.mxu0 0
        %914 = vmatpush1.bf16.msra.mxu0 0
        %915 = vmatprep.subr.bf16.mxu0 0
        %916 = vmatpush1.bf16.msra.mxu0 0
        %917 = vmatprep.subr.bf16.mxu0 0
        %918 = vmatpush1.bf16.msra.mxu0 0
        %919 = vmatprep.subr.bf16.mxu0 0
        %920 = vmatpush1.bf16.msra.mxu0 0
        %921 = vmatprep.subr.bf16.mxu0 0
        %922 = vmatpush1.bf16.msra.mxu0 0
        %923 = vmatprep.subr.bf16.mxu0 0
        %924 = vmatpush1.bf16.msra.mxu0 0
        %925 = vmatprep.subr.bf16.mxu0 0
        %926 = vmatpush1.bf16.msra.mxu0 0
        %927 = vmatprep.subr.bf16.mxu0 0
        %928 = vmatpush1.bf16.msra.mxu0 0
        %929 = vmatprep.subr.bf16.mxu0 0
        %930 = vmatpush1.bf16.msra.mxu0 0
        %931 = vmatprep.subr.bf16.mxu0 0
        %932 = vmatpush1.bf16.msra.mxu0 0
        %933 = vmatprep.subr.bf16.mxu0 0
        %934 = vmatpush1.bf16.msra.mxu0 0
        %935 = vmatprep.mubr.bf16.mxu0 0
        %936 = vmatmul.mubr.bf16.gmra.mrb[0].mxu0 %v901
        %v937 = vpop.f32.mrb[0].mxu0
        %v938 = vadd.f32 0.0, %v937
        %v939 = vpop.f32.mrb[0].mxu0
        %v940 = vpop.f32.mrb[0].mxu0
        %v941 = vpop.f32.mrb[0].mxu0
        %942 = vdwg.mxu0
        %v943 = vadd.f32 %v816, %v938
        %v944 = vld [vmem:[%s3] sm:$0x1]
        %v946 = vlaneseq
        %v947 = vshrl.u32 %v946, 7
        %v948 = vsub.s32 0, %v947
        %v949 = vrot.slane %v944, %v948
        %v951 = vadd.f32 %v943, %v949
        %v952 = vmax.f32 %v951, 0.0
        %v953 = vpack.c.bf16 %v952, %v952
        %v954 = vld [vmem:[%s4] sm:$0x3]
        %vm955 = vcmask 56320
        %v957 = vsel %vm955, %v954, 0
        %vm959 = vcmask 1042432
        %vm960 = vcmask 1043456
        %v961 = vsel %vm959, 4294967295, 65535
        %v962 = vsel %vm960, %v961, 0
        %v964 = vand.u32 %v953, %v962
        %966 = vmatprep.subr.bf16.mxu0 0
        %967 = vmatpush1.bf16.msra.mxu0 %v964
        %968 = vmatprep.subr.bf16.mxu0 0
        %969 = vmatpush1.bf16.msra.mxu0 0
        %970 = vmatprep.subr.bf16.mxu0 0
        %971 = vmatpush1.bf16.msra.mxu0 0
        %972 = vmatprep.subr.bf16.mxu0 0
        %973 = vmatpush1.bf16.msra.mxu0 0
        %974 = vmatprep.subr.bf16.mxu0 0
        %975 = vmatpush1.bf16.msra.mxu0 0
        %976 = vmatprep.subr.bf16.mxu0 0
        %977 = vmatpush1.bf16.msra.mxu0 0
        %978 = vmatprep.subr.bf16.mxu0 0
        %979 = vmatpush1.bf16.msra.mxu0 0
        %980 = vmatprep.subr.bf16.mxu0 0
        %981 = vmatpush1.bf16.msra.mxu0 0
        %982 = vmatprep.subr.bf16.mxu0 0
        %983 = vmatpush1.bf16.msra.mxu0 0
        %984 = vmatprep.subr.bf16.mxu0 0
        %985 = vmatpush1.bf16.msra.mxu0 0
        %986 = vmatprep.subr.bf16.mxu0 0
        %987 = vmatpush1.bf16.msra.mxu0 0
        %988 = vmatprep.subr.bf16.mxu0 0
        %989 = vmatpush1.bf16.msra.mxu0 0
        %990 = vmatprep.subr.bf16.mxu0 0
        %991 = vmatpush1.bf16.msra.mxu0 0
        %992 = vmatprep.subr.bf16.mxu0 0
        %993 = vmatpush1.bf16.msra.mxu0 0
        %994 = vmatprep.subr.bf16.mxu0 0
        %995 = vmatpush1.bf16.msra.mxu0 0
        %996 = vmatprep.subr.bf16.mxu0 0
        %997 = vmatpush1.bf16.msra.mxu0 0
        %998 = vmatprep.mubr.bf16.mxu0 0
        %999 = vmatmul.mubr.bf16.gmra.mrb[0].mxu0 %v957
        %v1000 = vpop.f32.mrb[0].mxu0
        %v1001 = vadd.f32 0.0, %v1000
        %v1002 = vpop.f32.mrb[0].mxu0
        %v1003 = vpop.f32.mrb[0].mxu0
        %v1004 = vpop.f32.mrb[0].mxu0
        %1005 = vdwg.mxu0
        %v1006 = vpack.c.bf16 %v1001, %v1001
        %v1007 = vld [vmem:[%s5] sm:$0xf]
        %v1008 = vld [vmem:[%s5 + $0x4] sm:$0xf]
        %v1009 = vld [vmem:[%s5 + $0x8] sm:$0xf]
        %v1010 = vld [vmem:[%s5 + $0xc] sm:$0xf]
        %v1011 = vld [vmem:[%s5 + $0x10] sm:$0xf]
        %v1012 = vld [vmem:[%s5 + $0x14] sm:$0xf]
        %v1013 = vld [vmem:[%s5 + $0x18] sm:$0xf]
        %s1014 = scalar_lea.vmem %s4, 2
        %v1015 = vld [vmem:[%s1014] sm:$0x3]
        %v1017 = vsel %vm955, %v1015, 0
        %1019 = vmatprep.subr.bf16.mxu0 0
        %1020 = vmatpush1.bf16.msra.mxu0 %v964
        %1021 = vmatprep.subr.bf16.mxu0 0
        %1022 = vmatpush1.bf16.msra.mxu0 0
        %1023 = vmatprep.subr.bf16.mxu0 0
        %1024 = vmatpush1.bf16.msra.mxu0 0
        %1025 = vmatprep.subr.bf16.mxu0 0
        %1026 = vmatpush1.bf16.msra.mxu0 0
        %1027 = vmatprep.subr.bf16.mxu0 0
        %1028 = vmatpush1.bf16.msra.mxu0 0
        %1029 = vmatprep.subr.bf16.mxu0 0
        %1030 = vmatpush1.bf16.msra.mxu0 0
        %1031 = vmatprep.subr.bf16.mxu0 0
        %1032 = vmatpush1.bf16.msra.mxu0 0
        %1033 = vmatprep.subr.bf16.mxu0 0
        %1034 = vmatpush1.bf16.msra.mxu0 0
        %1035 = vmatprep.subr.bf16.mxu0 0
        %1036 = vmatpush1.bf16.msra.mxu0 0
        %1037 = vmatprep.subr.bf16.mxu0 0
        %1038 = vmatpush1.bf16.msra.mxu0 0
        %1039 = vmatprep.subr.bf16.mxu0 0
        %1040 = vmatpush1.bf16.msra.mxu0 0
        %1041 = vmatprep.subr.bf16.mxu0 0
        %1042 = vmatpush1.bf16.msra.mxu0 0
        %1043 = vmatprep.subr.bf16.mxu0 0
        %1044 = vmatpush1.bf16.msra.mxu0 0
        %1045 = vmatprep.subr.bf16.mxu0 0
        %1046 = vmatpush1.bf16.msra.mxu0 0
        %1047 = vmatprep.subr.bf16.mxu0 0
        %1048 = vmatpush1.bf16.msra.mxu0 0
        %1049 = vmatprep.subr.bf16.mxu0 0
        %1050 = vmatpush1.bf16.msra.mxu0 0
        %1051 = vmatprep.mubr.bf16.mxu0 0
        %1052 = vmatmul.mubr.bf16.gmra.mrb[0].mxu0 %v1017
        %v1053 = vpop.f32.mrb[0].mxu0
        %v1054 = vadd.f32 0.0, %v1053
        %v1055 = vpop.f32.mrb[0].mxu0
        %v1056 = vpop.f32.mrb[0].mxu0
        %v1057 = vpop.f32.mrb[0].mxu0
        %1058 = vdwg.mxu0
        %v1059 = vpack.c.bf16 %v1054, %v1054
        %s1060 = scalar_lea.vmem %s5, 28
        %v1061 = vld [vmem:[%s1060] sm:$0xf]
        %v1062 = vld [vmem:[%s1060 + $0x4] sm:$0xf]
        %v1063 = vld [vmem:[%s1060 + $0x8] sm:$0xf]
        %v1064 = vld [vmem:[%s1060 + $0xc] sm:$0xf]
        %v1065 = vld [vmem:[%s1060 + $0x10] sm:$0xf]
        %v1066 = vld [vmem:[%s1060 + $0x14] sm:$0xf]
        %v1067 = vld [vmem:[%s1060 + $0x18] sm:$0xf]
        %v1075 = vunpack.c.l.b16 %v1061
        %v1076 = vunpack.c.l.b16 %v1062
        %v1077 = vunpack.c.l.b16 %v1063
        %v1078 = vunpack.c.l.b16 %v1064
        %v1079 = vunpack.c.l.b16 %v1065
        %v1080 = vunpack.c.l.b16 %v1066
        %v1081 = vunpack.c.l.b16 %v1067
        %v1082 = vpack.c.b16 %v1076, %v1075
        %v1083 = vpack.c.b16 %v1078, %v1077
        %v1084 = vpack.c.b16 %v1080, %v1079
        %v1085 = vpack.c.b16 %v1081, %v1081
        %vm1089 = vcmask 457728
        %v1091 = vsel %vm1089, %v1059, 0
        %v1094 = vsel %vm960, %v1085, 0
        %1096 = vmatprep.subr.bf16.mxu0 0
        %1097 = vmatpush1.bf16.msra.mxu0 %v1082
        %1098 = vmatprep.subr.bf16.mxu0 0
        %1099 = vmatpush1.bf16.msra.mxu0 %v1083
        %1100 = vmatprep.subr.bf16.mxu0 0
        %1101 = vmatpush1.bf16.msra.mxu0 %v1084
        %1102 = vmatprep.subr.bf16.mxu0 0
        %1103 = vmatpush1.bf16.msra.mxu0 %v1094
        %1104 = vmatprep.subr.bf16.mxu0 0
        %1105 = vmatpush1.bf16.msra.mxu0 0
        %1106 = vmatprep.subr.bf16.mxu0 0
        %1107 = vmatpush1.bf16.msra.mxu0 0
        %1108 = vmatprep.subr.bf16.mxu0 0
        %1109 = vmatpush1.bf16.msra.mxu0 0
        %1110 = vmatprep.subr.bf16.mxu0 0
        %1111 = vmatpush1.bf16.msra.mxu0 0
        %1112 = vmatprep.subr.bf16.mxu0 0
        %1113 = vmatpush1.bf16.msra.mxu0 0
        %1114 = vmatprep.subr.bf16.mxu0 0
        %1115 = vmatpush1.bf16.msra.mxu0 0
        %1116 = vmatprep.subr.bf16.mxu0 0
        %1117 = vmatpush1.bf16.msra.mxu0 0
        %1118 = vmatprep.subr.bf16.mxu0 0
        %1119 = vmatpush1.bf16.msra.mxu0 0
        %1120 = vmatprep.subr.bf16.mxu0 0
        %1121 = vmatpush1.bf16.msra.mxu0 0
        %1122 = vmatprep.subr.bf16.mxu0 0
        %1123 = vmatpush1.bf16.msra.mxu0 0
        %1124 = vmatprep.subr.bf16.mxu0 0
        %1125 = vmatpush1.bf16.msra.mxu0 0
        %1126 = vmatprep.subr.bf16.mxu0 0
        %1127 = vmatpush1.bf16.msra.mxu0 0
        %1128 = vmatprep.mubr.bf16.mxu0 0
        %1129 = vmatmul.mubr.bf16.gmra.mrb[0].mxu0 %v1091
        %v1130 = vpop.f32.mrb[0].mxu0
        %v1131 = vadd.f32 0.0, %v1130
        %v1132 = vpop.f32.mrb[0].mxu0
        %v1133 = vpop.f32.mrb[0].mxu0
        %v1134 = vpop.f32.mrb[0].mxu0
        %1135 = vdwg.mxu0
        %v1143 = vunpack.c.l.b16 %v1007
        %v1144 = vunpack.c.l.b16 %v1008
        %v1145 = vunpack.c.l.b16 %v1009
        %v1146 = vunpack.c.l.b16 %v1010
        %v1147 = vunpack.c.l.b16 %v1011
        %v1148 = vunpack.c.l.b16 %v1012
        %v1149 = vunpack.c.l.b16 %v1013
        %v1150 = vpack.c.b16 %v1144, %v1143
        %v1151 = vpack.c.b16 %v1146, %v1145
        %v1152 = vpack.c.b16 %v1148, %v1147
        %v1153 = vpack.c.b16 %v1149, %v1149
        %v1158 = vsel %vm1089, %v1006, 0
        %v1161 = vsel %vm960, %v1153, 0
        %1163 = vmatprep.subr.bf16.mxu0 0
        %1164 = vmatpush1.bf16.msra.mxu0 %v1150
        %1165 = vmatprep.subr.bf16.mxu0 0
        %1166 = vmatpush1.bf16.msra.mxu0 %v1151
        %1167 = vmatprep.subr.bf16.mxu0 0
        %1168 = vmatpush1.bf16.msra.mxu0 %v1152
        %1169 = vmatprep.subr.bf16.mxu0 0
        %1170 = vmatpush1.bf16.msra.mxu0 %v1161
        %1171 = vmatprep.subr.bf16.mxu0 0
        %1172 = vmatpush1.bf16.msra.mxu0 0
        %1173 = vmatprep.subr.bf16.mxu0 0
        %1174 = vmatpush1.bf16.msra.mxu0 0
        %1175 = vmatprep.subr.bf16.mxu0 0
        %1176 = vmatpush1.bf16.msra.mxu0 0
        %1177 = vmatprep.subr.bf16.mxu0 0
        %1178 = vmatpush1.bf16.msra.mxu0 0
        %1179 = vmatprep.subr.bf16.mxu0 0
        %1180 = vmatpush1.bf16.msra.mxu0 0
        %1181 = vmatprep.subr.bf16.mxu0 0
        %1182 = vmatpush1.bf16.msra.mxu0 0
        %1183 = vmatprep.subr.bf16.mxu0 0
        %1184 = vmatpush1.bf16.msra.mxu0 0
        %1185 = vmatprep.subr.bf16.mxu0 0
        %1186 = vmatpush1.bf16.msra.mxu0 0
        %1187 = vmatprep.subr.bf16.mxu0 0
        %1188 = vmatpush1.bf16.msra.mxu0 0
        %1189 = vmatprep.subr.bf16.mxu0 0
        %1190 = vmatpush1.bf16.msra.mxu0 0
        %1191 = vmatprep.subr.bf16.mxu0 0
        %1192 = vmatpush1.bf16.msra.mxu0 0
        %1193 = vmatprep.subr.bf16.mxu0 0
        %1194 = vmatpush1.bf16.msra.mxu0 0
        %1195 = vmatprep.mubr.bf16.mxu0 0
        %1196 = vmatmul.mubr.bf16.gmra.mrb[0].mxu0 %v1158
        %v1197 = vpop.f32.mrb[0].mxu0
        %v1198 = vadd.f32 %v1131, %v1197
        %v1199 = vpop.f32.mrb[0].mxu0
        %v1200 = vpop.f32.mrb[0].mxu0
        %v1201 = vpop.f32.mrb[0].mxu0
        %1202 = vdwg.mxu0
        %s1203 = scalar_lea.vmem %s4, 4
        %v1204 = vld [vmem:[%s1203] sm:$0x3]
        %v1206 = vsel %vm955, %v1204, 0
        %1208 = vmatprep.subr.bf16.mxu0 0
        %1209 = vmatpush1.bf16.msra.mxu0 %v964
        %1210 = vmatprep.subr.bf16.mxu0 0
        %1211 = vmatpush1.bf16.msra.mxu0 0
        %1212 = vmatprep.subr.bf16.mxu0 0
        %1213 = vmatpush1.bf16.msra.mxu0 0
        %1214 = vmatprep.subr.bf16.mxu0 0
        %1215 = vmatpush1.bf16.msra.mxu0 0
        %1216 = vmatprep.subr.bf16.mxu0 0
        %1217 = vmatpush1.bf16.msra.mxu0 0
        %1218 = vmatprep.subr.bf16.mxu0 0
        %1219 = vmatpush1.bf16.msra.mxu0 0
        %1220 = vmatprep.subr.bf16.mxu0 0
        %1221 = vmatpush1.bf16.msra.mxu0 0
        %1222 = vmatprep.subr.bf16.mxu0 0
        %1223 = vmatpush1.bf16.msra.mxu0 0
        %1224 = vmatprep.subr.bf16.mxu0 0
        %1225 = vmatpush1.bf16.msra.mxu0 0
        %1226 = vmatprep.subr.bf16.mxu0 0
        %1227 = vmatpush1.bf16.msra.mxu0 0
        %1228 = vmatprep.subr.bf16.mxu0 0
        %1229 = vmatpush1.bf16.msra.mxu0 0
        %1230 = vmatprep.subr.bf16.mxu0 0
        %1231 = vmatpush1.bf16.msra.mxu0 0
        %1232 = vmatprep.subr.bf16.mxu0 0
        %1233 = vmatpush1.bf16.msra.mxu0 0
        %1234 = vmatprep.subr.bf16.mxu0 0
        %1235 = vmatpush1.bf16.msra.mxu0 0
        %1236 = vmatprep.subr.bf16.mxu0 0
        %1237 = vmatpush1.bf16.msra.mxu0 0
        %1238 = vmatprep.subr.bf16.mxu0 0
        %1239 = vmatpush1.bf16.msra.mxu0 0
        %1240 = vmatprep.mubr.bf16.mxu0 0
        %1241 = vmatmul.mubr.bf16.gmra.mrb[0].mxu0 %v1206
        %v1242 = vpop.f32.mrb[0].mxu0
        %v1243 = vadd.f32 0.0, %v1242
        %v1244 = vpop.f32.mrb[0].mxu0
        %v1245 = vpop.f32.mrb[0].mxu0
        %v1246 = vpop.f32.mrb[0].mxu0
        %1247 = vdwg.mxu0
        %v1248 = vpack.c.bf16 %v1243, %v1243
        %s1249 = scalar_lea.vmem %s5, 56
        %v1250 = vld [vmem:[%s1249] sm:$0xf]
        %v1251 = vld [vmem:[%s1249 + $0x4] sm:$0xf]
        %v1252 = vld [vmem:[%s1249 + $0x8] sm:$0xf]
        %v1253 = vld [vmem:[%s1249 + $0xc] sm:$0xf]
        %v1254 = vld [vmem:[%s1249 + $0x10] sm:$0xf]
        %v1255 = vld [vmem:[%s1249 + $0x14] sm:$0xf]
        %v1256 = vld [vmem:[%s1249 + $0x18] sm:$0xf]
        %v1264 = vunpack.c.l.b16 %v1250
        %v1265 = vunpack.c.l.b16 %v1251
        %v1266 = vunpack.c.l.b16 %v1252
        %v1267 = vunpack.c.l.b16 %v1253
        %v1268 = vunpack.c.l.b16 %v1254
        %v1269 = vunpack.c.l.b16 %v1255
        %v1270 = vunpack.c.l.b16 %v1256
        %v1271 = vpack.c.b16 %v1265, %v1264
        %v1272 = vpack.c.b16 %v1267, %v1266
        %v1273 = vpack.c.b16 %v1269, %v1268
        %v1274 = vpack.c.b16 %v1270, %v1270
        %v1279 = vsel %vm1089, %v1248, 0
        %v1282 = vsel %vm960, %v1274, 0
        %1284 = vmatprep.subr.bf16.mxu0 0
        %1285 = vmatpush1.bf16.msra.mxu0 %v1271
        %1286 = vmatprep.subr.bf16.mxu0 0
        %1287 = vmatpush1.bf16.msra.mxu0 %v1272
        %1288 = vmatprep.subr.bf16.mxu0 0
        %1289 = vmatpush1.bf16.msra.mxu0 %v1273
        %1290 = vmatprep.subr.bf16.mxu0 0
        %1291 = vmatpush1.bf16.msra.mxu0 %v1282
        %1292 = vmatprep.subr.bf16.mxu0 0
        %1293 = vmatpush1.bf16.msra.mxu0 0
        %1294 = vmatprep.subr.bf16.mxu0 0
        %1295 = vmatpush1.bf16.msra.mxu0 0
        %1296 = vmatprep.subr.bf16.mxu0 0
        %1297 = vmatpush1.bf16.msra.mxu0 0
        %1298 = vmatprep.subr.bf16.mxu0 0
        %1299 = vmatpush1.bf16.msra.mxu0 0
        %1300 = vmatprep.subr.bf16.mxu0 0
        %1301 = vmatpush1.bf16.msra.mxu0 0
        %1302 = vmatprep.subr.bf16.mxu0 0
        %1303 = vmatpush1.bf16.msra.mxu0 0
        %1304 = vmatprep.subr.bf16.mxu0 0
        %1305 = vmatpush1.bf16.msra.mxu0 0
        %1306 = vmatprep.subr.bf16.mxu0 0
        %1307 = vmatpush1.bf16.msra.mxu0 0
        %1308 = vmatprep.subr.bf16.mxu0 0
        %1309 = vmatpush1.bf16.msra.mxu0 0
        %1310 = vmatprep.subr.bf16.mxu0 0
        %1311 = vmatpush1.bf16.msra.mxu0 0
        %1312 = vmatprep.subr.bf16.mxu0 0
        %1313 = vmatpush1.bf16.msra.mxu0 0
        %1314 = vmatprep.subr.bf16.mxu0 0
        %1315 = vmatpush1.bf16.msra.mxu0 0
        %1316 = vmatprep.mubr.bf16.mxu0 0
        %1317 = vmatmul.mubr.bf16.gmra.mrb[0].mxu0 %v1279
        %v1318 = vpop.f32.mrb[0].mxu0
        %v1319 = vadd.f32 0.0, %v1318
        %v1320 = vpop.f32.mrb[0].mxu0
        %v1321 = vpop.f32.mrb[0].mxu0
        %v1322 = vpop.f32.mrb[0].mxu0
        %1323 = vdwg.mxu0
        %v1324 = vadd.f32 %v1198, %v1319
        %v1325 = vld [vmem:[%s6] sm:$0x1]
        %v1327 = vlaneseq
        %v1328 = vshrl.u32 %v1327, 7
        %v1329 = vsub.s32 0, %v1328
        %v1330 = vrot.slane %v1325, %v1329
        %v1332 = vadd.f32 %v1324, %v1330
        %v1333 = vmax.f32 %v1332, 0.0
        %v1334 = vpack.c.bf16 %v1333, %v1333
        %v1335 = vld [vmem:[%s7] sm:$0x1]
        %vm1336 = vcmask 23552
        %v1338 = vsel %vm1336, %v1335, 0
        %vm1340 = vcmask 1040384
        %vm1341 = vcmask 1041408
        %v1342 = vsel %vm1340, 4294967295, 65535
        %v1343 = vsel %vm1341, %v1342, 0
        %v1345 = vand.u32 %v1334, %v1343
        %1347 = vmatprep.subr.bf16.mxu0 0
        %1348 = vmatpush1.bf16.msra.mxu0 %v1345
        %1349 = vmatprep.subr.bf16.mxu0 0
        %1350 = vmatpush1.bf16.msra.mxu0 0
        %1351 = vmatprep.subr.bf16.mxu0 0
        %1352 = vmatpush1.bf16.msra.mxu0 0
        %1353 = vmatprep.subr.bf16.mxu0 0
        %1354 = vmatpush1.bf16.msra.mxu0 0
        %1355 = vmatprep.subr.bf16.mxu0 0
        %1356 = vmatpush1.bf16.msra.mxu0 0
        %1357 = vmatprep.subr.bf16.mxu0 0
        %1358 = vmatpush1.bf16.msra.mxu0 0
        %1359 = vmatprep.subr.bf16.mxu0 0
        %1360 = vmatpush1.bf16.msra.mxu0 0
        %1361 = vmatprep.subr.bf16.mxu0 0
        %1362 = vmatpush1.bf16.msra.mxu0 0
        %1363 = vmatprep.subr.bf16.mxu0 0
        %1364 = vmatpush1.bf16.msra.mxu0 0
        %1365 = vmatprep.subr.bf16.mxu0 0
        %1366 = vmatpush1.bf16.msra.mxu0 0
        %1367 = vmatprep.subr.bf16.mxu0 0
        %1368 = vmatpush1.bf16.msra.mxu0 0
        %1369 = vmatprep.subr.bf16.mxu0 0
        %1370 = vmatpush1.bf16.msra.mxu0 0
        %1371 = vmatprep.subr.bf16.mxu0 0
        %1372 = vmatpush1.bf16.msra.mxu0 0
        %1373 = vmatprep.subr.bf16.mxu0 0
        %1374 = vmatpush1.bf16.msra.mxu0 0
        %1375 = vmatprep.subr.bf16.mxu0 0
        %1376 = vmatpush1.bf16.msra.mxu0 0
        %1377 = vmatprep.subr.bf16.mxu0 0
        %1378 = vmatpush1.bf16.msra.mxu0 0
        %1379 = vmatprep.mubr.bf16.mxu0 0
        %1380 = vmatmul.mubr.bf16.gmra.mrb[0].mxu0 %v1338
        %v1381 = vpop.f32.mrb[0].mxu0
        %v1382 = vadd.f32 0.0, %v1381
        %v1383 = vpop.f32.mrb[0].mxu0
        %v1384 = vpop.f32.mrb[0].mxu0
        %v1385 = vpop.f32.mrb[0].mxu0
        %1386 = vdwg.mxu0
        %v1387 = vpack.c.bf16 %v1382, %v1382
        %v1388 = vld [vmem:[%s8] sm:$0xf]
        %v1389 = vld [vmem:[%s8 + $0x4] sm:$0xf]
        %v1390 = vld [vmem:[%s8 + $0x8] sm:$0xf]
        %v1391 = vld [vmem:[%s8 + $0xc] sm:$0xf]
        %v1392 = vld [vmem:[%s8 + $0x10] sm:$0x3]
        %s1393 = scalar_lea.vmem %s7, 1
        %v1394 = vld [vmem:[%s1393] sm:$0x1]
        %v1396 = vsel %vm1336, %v1394, 0
        %1398 = vmatprep.subr.bf16.mxu0 0
        %1399 = vmatpush1.bf16.msra.mxu0 %v1345
        %1400 = vmatprep.subr.bf16.mxu0 0
        %1401 = vmatpush1.bf16.msra.mxu0 0
        %1402 = vmatprep.subr.bf16.mxu0 0
        %1403 = vmatpush1.bf16.msra.mxu0 0
        %1404 = vmatprep.subr.bf16.mxu0 0
        %1405 = vmatpush1.bf16.msra.mxu0 0
        %1406 = vmatprep.subr.bf16.mxu0 0
        %1407 = vmatpush1.bf16.msra.mxu0 0
        %1408 = vmatprep.subr.bf16.mxu0 0
        %1409 = vmatpush1.bf16.msra.mxu0 0
        %1410 = vmatprep.subr.bf16.mxu0 0
        %1411 = vmatpush1.bf16.msra.mxu0 0
        %1412 = vmatprep.subr.bf16.mxu0 0
        %1413 = vmatpush1.bf16.msra.mxu0 0
        %1414 = vmatprep.subr.bf16.mxu0 0
        %1415 = vmatpush1.bf16.msra.mxu0 0
        %1416 = vmatprep.subr.bf16.mxu0 0
        %1417 = vmatpush1.bf16.msra.mxu0 0
        %1418 = vmatprep.subr.bf16.mxu0 0
        %1419 = vmatpush1.bf16.msra.mxu0 0
        %1420 = vmatprep.subr.bf16.mxu0 0
        %1421 = vmatpush1.bf16.msra.mxu0 0
        %1422 = vmatprep.subr.bf16.mxu0 0
        %1423 = vmatpush1.bf16.msra.mxu0 0
        %1424 = vmatprep.subr.bf16.mxu0 0
        %1425 = vmatpush1.bf16.msra.mxu0 0
        %1426 = vmatprep.subr.bf16.mxu0 0
        %1427 = vmatpush1.bf16.msra.mxu0 0
        %1428 = vmatprep.subr.bf16.mxu0 0
        %1429 = vmatpush1.bf16.msra.mxu0 0
        %1430 = vmatprep.mubr.bf16.mxu0 0
        %1431 = vmatmul.mubr.bf16.gmra.mrb[0].mxu0 %v1396
        %v1432 = vpop.f32.mrb[0].mxu0
        %v1433 = vadd.f32 0.0, %v1432
        %v1434 = vpop.f32.mrb[0].mxu0
        %v1435 = vpop.f32.mrb[0].mxu0
        %v1436 = vpop.f32.mrb[0].mxu0
        %1437 = vdwg.mxu0
        %v1438 = vpack.c.bf16 %v1433, %v1433
        %s1439 = scalar_lea.vmem %s8, 20
        %v1440 = vld [vmem:[%s1439] sm:$0xf]
        %v1441 = vld [vmem:[%s1439 + $0x4] sm:$0xf]
        %v1442 = vld [vmem:[%s1439 + $0x8] sm:$0xf]
        %v1443 = vld [vmem:[%s1439 + $0xc] sm:$0xf]
        %v1444 = vld [vmem:[%s1439 + $0x10] sm:$0x3]
        %v1450 = vunpack.c.l.b16 %v1440
        %v1451 = vunpack.c.l.b16 %v1441
        %v1452 = vunpack.c.l.b16 %v1442
        %v1453 = vunpack.c.l.b16 %v1443
        %v1454 = vunpack.c.l.b16 %v1444
        %v1455 = vpack.c.b16 %v1451, %v1450
        %v1456 = vpack.c.b16 %v1453, %v1452
        %v1457 = vpack.c.b16 %v1454, %v1454
        %vm1460 = vcmask 293888
        %v1462 = vsel %vm1460, %v1438, 0
        %v1465 = vsel %vm1341, %v1457, 0
        %1467 = vmatprep.subr.bf16.mxu0 0
        %1468 = vmatpush1.bf16.msra.mxu0 %v1455
        %1469 = vmatprep.subr.bf16.mxu0 0
        %1470 = vmatpush1.bf16.msra.mxu0 %v1456
        %1471 = vmatprep.subr.bf16.mxu0 0
        %1472 = vmatpush1.bf16.msra.mxu0 %v1465
        %1473 = vmatprep.subr.bf16.mxu0 0
        %1474 = vmatpush1.bf16.msra.mxu0 0
        %1475 = vmatprep.subr.bf16.mxu0 0
        %1476 = vmatpush1.bf16.msra.mxu0 0
        %1477 = vmatprep.subr.bf16.mxu0 0
        %1478 = vmatpush1.bf16.msra.mxu0 0
        %1479 = vmatprep.subr.bf16.mxu0 0
        %1480 = vmatpush1.bf16.msra.mxu0 0
        %1481 = vmatprep.subr.bf16.mxu0 0
        %1482 = vmatpush1.bf16.msra.mxu0 0
        %1483 = vmatprep.subr.bf16.mxu0 0
        %1484 = vmatpush1.bf16.msra.mxu0 0
        %1485 = vmatprep.subr.bf16.mxu0 0
        %1486 = vmatpush1.bf16.msra.mxu0 0
        %1487 = vmatprep.subr.bf16.mxu0 0
        %1488 = vmatpush1.bf16.msra.mxu0 0
        %1489 = vmatprep.subr.bf16.mxu0 0
        %1490 = vmatpush1.bf16.msra.mxu0 0
        %1491 = vmatprep.subr.bf16.mxu0 0
        %1492 = vmatpush1.bf16.msra.mxu0 0
        %1493 = vmatprep.subr.bf16.mxu0 0
        %1494 = vmatpush1.bf16.msra.mxu0 0
        %1495 = vmatprep.subr.bf16.mxu0 0
        %1496 = vmatpush1.bf16.msra.mxu0 0
        %1497 = vmatprep.subr.bf16.mxu0 0
        %1498 = vmatpush1.bf16.msra.mxu0 0
        %1499 = vmatprep.mubr.bf16.mxu0 0
        %1500 = vmatmul.mubr.bf16.gmra.mrb[0].mxu0 %v1462
        %v1501 = vpop.f32.mrb[0].mxu0
        %v1502 = vadd.f32 0.0, %v1501
        %v1503 = vpop.f32.mrb[0].mxu0
        %v1504 = vpop.f32.mrb[0].mxu0
        %v1505 = vpop.f32.mrb[0].mxu0
        %1506 = vdwg.mxu0
        %v1512 = vunpack.c.l.b16 %v1388
        %v1513 = vunpack.c.l.b16 %v1389
        %v1514 = vunpack.c.l.b16 %v1390
        %v1515 = vunpack.c.l.b16 %v1391
        %v1516 = vunpack.c.l.b16 %v1392
        %v1517 = vpack.c.b16 %v1513, %v1512
        %v1518 = vpack.c.b16 %v1515, %v1514
        %v1519 = vpack.c.b16 %v1516, %v1516
        %v1523 = vsel %vm1460, %v1387, 0
        %v1526 = vsel %vm1341, %v1519, 0
        %1528 = vmatprep.subr.bf16.mxu0 0
        %1529 = vmatpush1.bf16.msra.mxu0 %v1517
        %1530 = vmatprep.subr.bf16.mxu0 0
        %1531 = vmatpush1.bf16.msra.mxu0 %v1518
        %1532 = vmatprep.subr.bf16.mxu0 0
        %1533 = vmatpush1.bf16.msra.mxu0 %v1526
        %1534 = vmatprep.subr.bf16.mxu0 0
        %1535 = vmatpush1.bf16.msra.mxu0 0
        %1536 = vmatprep.subr.bf16.mxu0 0
        %1537 = vmatpush1.bf16.msra.mxu0 0
        %1538 = vmatprep.subr.bf16.mxu0 0
        %1539 = vmatpush1.bf16.msra.mxu0 0
        %1540 = vmatprep.subr.bf16.mxu0 0
        %1541 = vmatpush1.bf16.msra.mxu0 0
        %1542 = vmatprep.subr.bf16.mxu0 0
        %1543 = vmatpush1.bf16.msra.mxu0 0
        %1544 = vmatprep.subr.bf16.mxu0 0
        %1545 = vmatpush1.bf16.msra.mxu0 0
        %1546 = vmatprep.subr.bf16.mxu0 0
        %1547 = vmatpush1.bf16.msra.mxu0 0
        %1548 = vmatprep.subr.bf16.mxu0 0
        %1549 = vmatpush1.bf16.msra.mxu0 0
        %1550 = vmatprep.subr.bf16.mxu0 0
        %1551 = vmatpush1.bf16.msra.mxu0 0
        %1552 = vmatprep.subr.bf16.mxu0 0
        %1553 = vmatpush1.bf16.msra.mxu0 0
        %1554 = vmatprep.subr.bf16.mxu0 0
        %1555 = vmatpush1.bf16.msra.mxu0 0
        %1556 = vmatprep.subr.bf16.mxu0 0
        %1557 = vmatpush1.bf16.msra.mxu0 0
        %1558 = vmatprep.subr.bf16.mxu0 0
        %1559 = vmatpush1.bf16.msra.mxu0 0
        %1560 = vmatprep.mubr.bf16.mxu0 0
        %1561 = vmatmul.mubr.bf16.gmra.mrb[0].mxu0 %v1523
        %v1562 = vpop.f32.mrb[0].mxu0
        %v1563 = vadd.f32 %v1502, %v1562
        %v1564 = vpop.f32.mrb[0].mxu0
        %v1565 = vpop.f32.mrb[0].mxu0
        %v1566 = vpop.f32.mrb[0].mxu0
        %1567 = vdwg.mxu0
        %s1568 = scalar_lea.vmem %s7, 2
        %v1569 = vld [vmem:[%s1568] sm:$0x1]
        %v1571 = vsel %vm1336, %v1569, 0
        %1573 = vmatprep.subr.bf16.mxu0 0
        %1574 = vmatpush1.bf16.msra.mxu0 %v1345
        %1575 = vmatprep.subr.bf16.mxu0 0
        %1576 = vmatpush1.bf16.msra.mxu0 0
        %1577 = vmatprep.subr.bf16.mxu0 0
        %1578 = vmatpush1.bf16.msra.mxu0 0
        %1579 = vmatprep.subr.bf16.mxu0 0
        %1580 = vmatpush1.bf16.msra.mxu0 0
        %1581 = vmatprep.subr.bf16.mxu0 0
        %1582 = vmatpush1.bf16.msra.mxu0 0
        %1583 = vmatprep.subr.bf16.mxu0 0
        %1584 = vmatpush1.bf16.msra.mxu0 0
        %1585 = vmatprep.subr.bf16.mxu0 0
        %1586 = vmatpush1.bf16.msra.mxu0 0
        %1587 = vmatprep.subr.bf16.mxu0 0
        %1588 = vmatpush1.bf16.msra.mxu0 0
        %1589 = vmatprep.subr.bf16.mxu0 0
        %1590 = vmatpush1.bf16.msra.mxu0 0
        %1591 = vmatprep.subr.bf16.mxu0 0
        %1592 = vmatpush1.bf16.msra.mxu0 0
        %1593 = vmatprep.subr.bf16.mxu0 0
        %1594 = vmatpush1.bf16.msra.mxu0 0
        %1595 = vmatprep.subr.bf16.mxu0 0
        %1596 = vmatpush1.bf16.msra.mxu0 0
        %1597 = vmatprep.subr.bf16.mxu0 0
        %1598 = vmatpush1.bf16.msra.mxu0 0
        %1599 = vmatprep.subr.bf16.mxu0 0
        %1600 = vmatpush1.bf16.msra.mxu0 0
        %1601 = vmatprep.subr.bf16.mxu0 0
        %1602 = vmatpush1.bf16.msra.mxu0 0
        %1603 = vmatprep.subr.bf16.mxu0 0
        %1604 = vmatpush1.bf16.msra.mxu0 0
        %1605 = vmatprep.mubr.bf16.mxu0 0
        %1606 = vmatmul.mubr.bf16.gmra.mrb[0].mxu0 %v1571
        %v1607 = vpop.f32.mrb[0].mxu0
        %v1608 = vadd.f32 0.0, %v1607
        %v1609 = vpop.f32.mrb[0].mxu0
        %v1610 = vpop.f32.mrb[0].mxu0
        %v1611 = vpop.f32.mrb[0].mxu0
        %1612 = vdwg.mxu0
        %v1613 = vpack.c.bf16 %v1608, %v1608
        %s1614 = scalar_lea.vmem %s8, 40
        %v1615 = vld [vmem:[%s1614] sm:$0xf]
        %v1616 = vld [vmem:[%s1614 + $0x4] sm:$0xf]
        %v1617 = vld [vmem:[%s1614 + $0x8] sm:$0xf]
        %v1618 = vld [vmem:[%s1614 + $0xc] sm:$0xf]
        %v1619 = vld [vmem:[%s1614 + $0x10] sm:$0x3]
        %v1625 = vunpack.c.l.b16 %v1615
        %v1626 = vunpack.c.l.b16 %v1616
        %v1627 = vunpack.c.l.b16 %v1617
        %v1628 = vunpack.c.l.b16 %v1618
        %v1629 = vunpack.c.l.b16 %v1619
        %v1630 = vpack.c.b16 %v1626, %v1625
        %v1631 = vpack.c.b16 %v1628, %v1627
        %v1632 = vpack.c.b16 %v1629, %v1629
        %v1636 = vsel %vm1460, %v1613, 0
        %v1639 = vsel %vm1341, %v1632, 0
        %1641 = vmatprep.subr.bf16.mxu0 0
        %1642 = vmatpush1.bf16.msra.mxu0 %v1630
        %1643 = vmatprep.subr.bf16.mxu0 0
        %1644 = vmatpush1.bf16.msra.mxu0 %v1631
        %1645 = vmatprep.subr.bf16.mxu0 0
        %1646 = vmatpush1.bf16.msra.mxu0 %v1639
        %1647 = vmatprep.subr.bf16.mxu0 0
        %1648 = vmatpush1.bf16.msra.mxu0 0
        %1649 = vmatprep.subr.bf16.mxu0 0
        %1650 = vmatpush1.bf16.msra.mxu0 0
        %1651 = vmatprep.subr.bf16.mxu0 0
        %1652 = vmatpush1.bf16.msra.mxu0 0
        %1653 = vmatprep.subr.bf16.mxu0 0
        %1654 = vmatpush1.bf16.msra.mxu0 0
        %1655 = vmatprep.subr.bf16.mxu0 0
        %1656 = vmatpush1.bf16.msra.mxu0 0
        %1657 = vmatprep.subr.bf16.mxu0 0
        %1658 = vmatpush1.bf16.msra.mxu0 0
        %1659 = vmatprep.subr.bf16.mxu0 0
        %1660 = vmatpush1.bf16.msra.mxu0 0
        %1661 = vmatprep.subr.bf16.mxu0 0
        %1662 = vmatpush1.bf16.msra.mxu0 0
        %1663 = vmatprep.subr.bf16.mxu0 0
        %1664 = vmatpush1.bf16.msra.mxu0 0
        %1665 = vmatprep.subr.bf16.mxu0 0
        %1666 = vmatpush1.bf16.msra.mxu0 0
        %1667 = vmatprep.subr.bf16.mxu0 0
        %1668 = vmatpush1.bf16.msra.mxu0 0
        %1669 = vmatprep.subr.bf16.mxu0 0
        %1670 = vmatpush1.bf16.msra.mxu0 0
        %1671 = vmatprep.subr.bf16.mxu0 0
        %1672 = vmatpush1.bf16.msra.mxu0 0
        %1673 = vmatprep.mubr.bf16.mxu0 0
        %1674 = vmatmul.mubr.bf16.gmra.mrb[0].mxu0 %v1636
        %v1675 = vpop.f32.mrb[0].mxu0
        %v1676 = vadd.f32 0.0, %v1675
        %v1677 = vpop.f32.mrb[0].mxu0
        %v1678 = vpop.f32.mrb[0].mxu0
        %v1679 = vpop.f32.mrb[0].mxu0
        %1680 = vdwg.mxu0
        %v1681 = vadd.f32 %v1563, %v1676
        %v1682 = vld [vmem:[%s9] sm:$0x1]
        %v1683 = vadd.f32 %v1681, %v1682
        %v1684 = vmax.f32 %v1683, 0.0
        %v1685 = vpack.c.bf16 %v1684, %v1684
        %v1686 = vld [vmem:[%s10] sm:$0xf]
        %v1687 = vld [vmem:[%s10 + $0x4] sm:$0xf]
        %v1688 = vld [vmem:[%s10 + $0x8] sm:$0xf]
        %v1689 = vld [vmem:[%s10 + $0xc] sm:$0xf]
        %v1690 = vld [vmem:[%s10 + $0x10] sm:$0xf]
        %v1691 = vld [vmem:[%s10 + $0x14] sm:$0xf]
        %v1692 = vld [vmem:[%s10 + $0x18] sm:$0xf]
        %v1693 = vld [vmem:[%s10 + $0x1c] sm:$0xf]
        %v1694 = vld [vmem:[%s11] sm:$0x1]
        %v1703 = vunpack.c.l.b16 %v1686
        %v1704 = vunpack.c.l.b16 %v1687
        %v1705 = vunpack.c.l.b16 %v1688
        %v1706 = vunpack.c.l.b16 %v1689
        %v1707 = vunpack.c.l.b16 %v1690
        %v1708 = vunpack.c.l.b16 %v1691
        %v1709 = vunpack.c.l.b16 %v1692
        %v1710 = vunpack.c.l.b16 %v1693
        %v1711 = vpack.c.b16 %v1704, %v1703
        %v1712 = vpack.c.b16 %v1706, %v1705
        %v1713 = vpack.c.b16 %v1708, %v1707
        %v1714 = vpack.c.b16 %v1710, %v1709
        %v1720 = vsel %vm710, %v1685, 0
        %1722 = vmatprep.subr.bf16.mxu0 0
        %1723 = vmatpush1.bf16.msra.mxu0 %v1711
        %1724 = vmatprep.subr.bf16.mxu0 0
        %1725 = vmatpush1.bf16.msra.mxu0 %v1712
        %1726 = vmatprep.subr.bf16.mxu0 0
        %1727 = vmatpush1.bf16.msra.mxu0 %v1713
        %1728 = vmatprep.subr.bf16.mxu0 0
        %1729 = vmatpush1.bf16.msra.mxu0 %v1714
        %1730 = vmatprep.subr.bf16.mxu0 0
        %1731 = vmatpush1.bf16.msra.mxu0 0
        %1732 = vmatprep.subr.bf16.mxu0 0
        %1733 = vmatpush1.bf16.msra.mxu0 0
        %1734 = vmatprep.subr.bf16.mxu0 0
        %1735 = vmatpush1.bf16.msra.mxu0 0
        %1736 = vmatprep.subr.bf16.mxu0 0
        %1737 = vmatpush1.bf16.msra.mxu0 0
        %1738 = vmatprep.subr.bf16.mxu0 0
        %1739 = vmatpush1.bf16.msra.mxu0 0
        %1740 = vmatprep.subr.bf16.mxu0 0
        %1741 = vmatpush1.bf16.msra.mxu0 0
        %1742 = vmatprep.subr.bf16.mxu0 0
        %1743 = vmatpush1.bf16.msra.mxu0 0
        %1744 = vmatprep.subr.bf16.mxu0 0
        %1745 = vmatpush1.bf16.msra.mxu0 0
        %1746 = vmatprep.subr.bf16.mxu0 0
        %1747 = vmatpush1.bf16.msra.mxu0 0
        %1748 = vmatprep.subr.bf16.mxu0 0
        %1749 = vmatpush1.bf16.msra.mxu0 0
        %1750 = vmatprep.subr.bf16.mxu0 0
        %1751 = vmatpush1.bf16.msra.mxu0 0
        %1752 = vmatprep.subr.bf16.mxu0 0
        %1753 = vmatpush1.bf16.msra.mxu0 0
        %1754 = vmatprep.mubr.bf16.mxu0 0
        %1755 = vmatmul.mubr.bf16.gmra.mrb[0].mxu0 %v1720
        %v1756 = vpop.f32.mrb[0].mxu0
        %v1757 = vadd.f32 %v1694, %v1756
        %v1758 = vpop.f32.mrb[0].mxu0
        %v1759 = vpop.f32.mrb[0].mxu0
        %v1760 = vpop.f32.mrb[0].mxu0
        %1761 = vdwg.mxu0
        %v1762 = vmax.f32 %v1757, 0.0
        %v1763 = vpack.c.bf16 %v1762, %v1762
        %v1764 = vld [vmem:[%s12] sm:$0xf]
        %v1765 = vld [vmem:[%s12 + $0x4] sm:$0xf]
        %v1766 = vld [vmem:[%s12 + $0x8] sm:$0xf]
        %v1767 = vld [vmem:[%s12 + $0xc] sm:$0xf]
        %v1768 = vld [vmem:[%s12 + $0x10] sm:$0xf]
        %v1769 = vld [vmem:[%s12 + $0x14] sm:$0xf]
        %v1770 = vld [vmem:[%s12 + $0x18] sm:$0xf]
        %v1771 = vld [vmem:[%s12 + $0x1c] sm:$0xf]
        %v1772 = vld [vmem:[%s13] sm:$0x1]
        %v1781 = vunpack.c.l.b16 %v1764
        %v1782 = vunpack.c.l.b16 %v1765
        %v1783 = vunpack.c.l.b16 %v1766
        %v1784 = vunpack.c.l.b16 %v1767
        %v1785 = vunpack.c.l.b16 %v1768
        %v1786 = vunpack.c.l.b16 %v1769
        %v1787 = vunpack.c.l.b16 %v1770
        %v1788 = vunpack.c.l.b16 %v1771
        %v1789 = vpack.c.b16 %v1782, %v1781
        %v1790 = vpack.c.b16 %v1784, %v1783
        %v1791 = vpack.c.b16 %v1786, %v1785
        %v1792 = vpack.c.b16 %v1788, %v1787
        %v1798 = vsel %vm710, %v1763, 0
        %1800 = vmatprep.subr.bf16.mxu0 0
        %1801 = vmatpush1.bf16.msra.mxu0 %v1789
        %1802 = vmatprep.subr.bf16.mxu0 0
        %1803 = vmatpush1.bf16.msra.mxu0 %v1790
        %1804 = vmatprep.subr.bf16.mxu0 0
        %1805 = vmatpush1.bf16.msra.mxu0 %v1791
        %1806 = vmatprep.subr.bf16.mxu0 0
        %1807 = vmatpush1.bf16.msra.mxu0 %v1792
        %1808 = vmatprep.subr.bf16.mxu0 0
        %1809 = vmatpush1.bf16.msra.mxu0 0
        %1810 = vmatprep.subr.bf16.mxu0 0
        %1811 = vmatpush1.bf16.msra.mxu0 0
        %1812 = vmatprep.subr.bf16.mxu0 0
        %1813 = vmatpush1.bf16.msra.mxu0 0
        %1814 = vmatprep.subr.bf16.mxu0 0
        %1815 = vmatpush1.bf16.msra.mxu0 0
        %1816 = vmatprep.subr.bf16.mxu0 0
        %1817 = vmatpush1.bf16.msra.mxu0 0
        %1818 = vmatprep.subr.bf16.mxu0 0
        %1819 = vmatpush1.bf16.msra.mxu0 0
        %1820 = vmatprep.subr.bf16.mxu0 0
        %1821 = vmatpush1.bf16.msra.mxu0 0
        %1822 = vmatprep.subr.bf16.mxu0 0
        %1823 = vmatpush1.bf16.msra.mxu0 0
        %1824 = vmatprep.subr.bf16.mxu0 0
        %1825 = vmatpush1.bf16.msra.mxu0 0
        %1826 = vmatprep.subr.bf16.mxu0 0
        %1827 = vmatpush1.bf16.msra.mxu0 0
        %1828 = vmatprep.subr.bf16.mxu0 0
        %1829 = vmatpush1.bf16.msra.mxu0 0
        %1830 = vmatprep.subr.bf16.mxu0 0
        %1831 = vmatpush1.bf16.msra.mxu0 0
        %1832 = vmatprep.mubr.bf16.mxu0 0
        %1833 = vmatmul.mubr.bf16.gmra.mrb[0].mxu0 %v1798
        %v1834 = vpop.f32.mrb[0].mxu0
        %v1835 = vadd.f32 %v1772, %v1834
        %v1836 = vpop.f32.mrb[0].mxu0
        %v1837 = vpop.f32.mrb[0].mxu0
        %v1838 = vpop.f32.mrb[0].mxu0
        %1839 = vdwg.mxu0
        %v1840 = vmax.f32 %v1835, 0.0
        %v1841 = vpack.c.bf16 %v1840, %v1840
        %v1842 = vld [vmem:[%s14] sm:$0xf]
        %v1843 = vld [vmem:[%s14 + $0x4] sm:$0xf]
        %v1844 = vld [vmem:[%s14 + $0x8] sm:$0xf]
        %v1845 = vld [vmem:[%s14 + $0xc] sm:$0xf]
        %v1846 = vld [vmem:[%s14 + $0x10] sm:$0xf]
        %v1847 = vld [vmem:[%s14 + $0x14] sm:$0xf]
        %v1848 = vld [vmem:[%s14 + $0x18] sm:$0xf]
        %v1849 = vld [vmem:[%s14 + $0x1c] sm:$0xf]
        %v1850 = vld [vmem:[%s15] sm:$0x1]
        %v1859 = vunpack.c.l.b16 %v1842
        %v1860 = vunpack.c.l.b16 %v1843
        %v1861 = vunpack.c.l.b16 %v1844
        %v1862 = vunpack.c.l.b16 %v1845
        %v1863 = vunpack.c.l.b16 %v1846
        %v1864 = vunpack.c.l.b16 %v1847
        %v1865 = vunpack.c.l.b16 %v1848
        %v1866 = vunpack.c.l.b16 %v1849
        %v1867 = vpack.c.b16 %v1860, %v1859
        %v1868 = vpack.c.b16 %v1862, %v1861
        %v1869 = vpack.c.b16 %v1864, %v1863
        %v1870 = vpack.c.b16 %v1866, %v1865
        %v1876 = vsel %vm710, %v1841, 0
        %1878 = vmatprep.subr.bf16.mxu0 0
        %1879 = vmatpush1.bf16.msra.mxu0 %v1867
        %1880 = vmatprep.subr.bf16.mxu0 0
        %1881 = vmatpush1.bf16.msra.mxu0 %v1868
        %1882 = vmatprep.subr.bf16.mxu0 0
        %1883 = vmatpush1.bf16.msra.mxu0 %v1869
        %1884 = vmatprep.subr.bf16.mxu0 0
        %1885 = vmatpush1.bf16.msra.mxu0 %v1870
        %1886 = vmatprep.subr.bf16.mxu0 0
        %1887 = vmatpush1.bf16.msra.mxu0 0
        %1888 = vmatprep.subr.bf16.mxu0 0
        %1889 = vmatpush1.bf16.msra.mxu0 0
        %1890 = vmatprep.subr.bf16.mxu0 0
        %1891 = vmatpush1.bf16.msra.mxu0 0
        %1892 = vmatprep.subr.bf16.mxu0 0
        %1893 = vmatpush1.bf16.msra.mxu0 0
        %1894 = vmatprep.subr.bf16.mxu0 0
        %1895 = vmatpush1.bf16.msra.mxu0 0
        %1896 = vmatprep.subr.bf16.mxu0 0
        %1897 = vmatpush1.bf16.msra.mxu0 0
        %1898 = vmatprep.subr.bf16.mxu0 0
        %1899 = vmatpush1.bf16.msra.mxu0 0
        %1900 = vmatprep.subr.bf16.mxu0 0
        %1901 = vmatpush1.bf16.msra.mxu0 0
        %1902 = vmatprep.subr.bf16.mxu0 0
        %1903 = vmatpush1.bf16.msra.mxu0 0
        %1904 = vmatprep.subr.bf16.mxu0 0
        %1905 = vmatpush1.bf16.msra.mxu0 0
        %1906 = vmatprep.subr.bf16.mxu0 0
        %1907 = vmatpush1.bf16.msra.mxu0 0
        %1908 = vmatprep.subr.bf16.mxu0 0
        %1909 = vmatpush1.bf16.msra.mxu0 0
        %1910 = vmatprep.mubr.bf16.mxu0 0
        %1911 = vmatmul.mubr.bf16.gmra.mrb[0].mxu0 %v1876
        %v1912 = vpop.f32.mrb[0].mxu0
        %v1913 = vadd.f32 %v1850, %v1912
        %v1914 = vpop.f32.mrb[0].mxu0
        %v1915 = vpop.f32.mrb[0].mxu0
        %v1916 = vpop.f32.mrb[0].mxu0
        %1917 = vdwg.mxu0
        %v1918 = vmax.f32 %v1913, 0.0
        %v1919 = vpack.c.bf16 %v1918, %v1918
        %v1920 = vld [vmem:[%s16] sm:$0xf]
        %v1921 = vld [vmem:[%s16 + $0x4] sm:$0xf]
        %v1922 = vld [vmem:[%s16 + $0x8] sm:$0xf]
        %v1923 = vld [vmem:[%s16 + $0xc] sm:$0xf]
        %v1924 = vld [vmem:[%s16 + $0x10] sm:$0xf]
        %v1925 = vld [vmem:[%s16 + $0x14] sm:$0xf]
        %v1926 = vld [vmem:[%s16 + $0x18] sm:$0xf]
        %v1927 = vld [vmem:[%s16 + $0x1c] sm:$0xf]
        %v1928 = vld [vmem:[%s16 + $0x20] sm:$0xf]
        %v1929 = vld [vmem:[%s16 + $0x24] sm:$0xf]
        %v1930 = vld [vmem:[%s16 + $0x28] sm:$0xf]
        %v1931 = vld [vmem:[%s16 + $0x2c] sm:$0xf]
        %v1932 = vld [vmem:[%s16 + $0x30] sm:$0xf]
        %v1933 = vld [vmem:[%s16 + $0x34] sm:$0xf]
        %v1934 = vld [vmem:[%s16 + $0x38] sm:$0xf]
        %v1935 = vld [vmem:[%s16 + $0x3c] sm:$0xf]
        %v1936 = vld [vmem:[%s17] sm:$0x1]
        %v1953 = vunpack.c.l.b16 %v1920
        %v1954 = vunpack.c.l.b16 %v1921
        %v1955 = vunpack.c.l.b16 %v1922
        %v1956 = vunpack.c.l.b16 %v1923
        %v1957 = vunpack.c.l.b16 %v1924
        %v1958 = vunpack.c.l.b16 %v1925
        %v1959 = vunpack.c.l.b16 %v1926
        %v1960 = vunpack.c.l.b16 %v1927
        %v1961 = vunpack.c.l.b16 %v1928
        %v1962 = vunpack.c.l.b16 %v1929
        %v1963 = vunpack.c.l.b16 %v1930
        %v1964 = vunpack.c.l.b16 %v1931
        %v1965 = vunpack.c.l.b16 %v1932
        %v1966 = vunpack.c.l.b16 %v1933
        %v1967 = vunpack.c.l.b16 %v1934
        %v1968 = vunpack.c.l.b16 %v1935
        %v1969 = vpack.c.b16 %v1954, %v1953
        %v1970 = vpack.c.b16 %v1956, %v1955
        %v1971 = vpack.c.b16 %v1958, %v1957
        %v1972 = vpack.c.b16 %v1960, %v1959
        %v1973 = vpack.c.b16 %v1962, %v1961
        %v1974 = vpack.c.b16 %v1964, %v1963
        %v1975 = vpack.c.b16 %v1966, %v1965
        %v1976 = vpack.c.b16 %v1968, %v1967
        %1985 = vmatprep.subr.bf16.mxu0 0
        %1986 = vmatpush1.bf16.msra.mxu0 %v1969
        %1987 = vmatprep.subr.bf16.mxu0 0
        %1988 = vmatpush1.bf16.msra.mxu0 %v1970
        %1989 = vmatprep.subr.bf16.mxu0 0
        %1990 = vmatpush1.bf16.msra.mxu0 %v1971
        %1991 = vmatprep.subr.bf16.mxu0 0
        %1992 = vmatpush1.bf16.msra.mxu0 %v1972
        %1993 = vmatprep.subr.bf16.mxu0 0
        %1994 = vmatpush1.bf16.msra.mxu0 %v1973
        %1995 = vmatprep.subr.bf16.mxu0 0
        %1996 = vmatpush1.bf16.msra.mxu0 %v1974
        %1997 = vmatprep.subr.bf16.mxu0 0
        %1998 = vmatpush1.bf16.msra.mxu0 %v1975
        %1999 = vmatprep.subr.bf16.mxu0 0
        %2000 = vmatpush1.bf16.msra.mxu0 %v1976
        %2001 = vmatprep.subr.bf16.mxu0 0
        %2002 = vmatpush1.bf16.msra.mxu0 0
        %2003 = vmatprep.subr.bf16.mxu0 0
        %2004 = vmatpush1.bf16.msra.mxu0 0
        %2005 = vmatprep.subr.bf16.mxu0 0
        %2006 = vmatpush1.bf16.msra.mxu0 0
        %2007 = vmatprep.subr.bf16.mxu0 0
        %2008 = vmatpush1.bf16.msra.mxu0 0
        %2009 = vmatprep.subr.bf16.mxu0 0
        %2010 = vmatpush1.bf16.msra.mxu0 0
        %2011 = vmatprep.subr.bf16.mxu0 0
        %2012 = vmatpush1.bf16.msra.mxu0 0
        %2013 = vmatprep.subr.bf16.mxu0 0
        %2014 = vmatpush1.bf16.msra.mxu0 0
        %2015 = vmatprep.subr.bf16.mxu0 0
        %2016 = vmatpush1.bf16.msra.mxu0 0
        %2017 = vmatprep.mubr.bf16.mxu0 0
        %2018 = vmatmul.mubr.bf16.gmra.mrb[0].mxu0 %v1919
        %v2019 = vpop.f32.mrb[0].mxu0
        %v2020 = vadd.f32 %v1936, %v2019
        %v2021 = vpop.f32.mrb[0].mxu0
        %v2022 = vpop.f32.mrb[0].mxu0
        %v2023 = vpop.f32.mrb[0].mxu0
        %2024 = vdwg.mxu0
        %vm2025 = vcmask 32768
        %2026 = vst.msk [vmem:[%s567] sm:$0x1] %vm2025, %v2020
        %s2027 = sand.u32 %s423, 1
        %s2028 = scalar_lea.sflag [#allocation3], %s2027
        %s2029 = sand.u32 %s423, 1
        %s2030 = scalar_lea.vmem [#allocation2], %s2029
        // Predicated region
        $region93: #{qnet_forward.1} parent=91 // pred_check
          %p2031 = pneg %p433
        $region94: #{qnet_forward.1} parent=91 // pred_check_branch
          %2033 = sbr.rel (%p2031) target = $region96
        $region95: #{qnet_forward.1} parent=91 // pred_region
          %s2035 = ssub.s32 16, 16
          %2036 = vsyncadd %s2028, %s2035
          %s2037 = smul.addr %s32, 16
          %s2038 = scalar_lea.hbm %s18, %s2037
          %s2040 = sshll.u32 %s2030, 4
          %s2041 = int_to_ptr.vmem [resolvable:$true] %s2040
          %2043 = dma.vmem_to_hbm [thread:$0]  %s2041, 16, %s2038, %s2028
        $region96: #{qnet_forward.1} parent=91 // pred_fallthru
          _
      $region92: #{qnet_forward.1} parent=5 // pred_fallthru
        _
      %p2044 = scmp.le.s32.totalorder 2, %s27
      // Predicated region
      $region97: #{qnet_forward.1} parent=5 // pred_check
        %p2045 = pneg %p2044
      $region98: #{qnet_forward.1} parent=5 // pred_check_branch
        %2047 = sbr.rel (%p2045) target = $region100
      $region99: #{qnet_forward.1} parent=5 // pred_region
        %s2048 = ssub.s32 %s27, 2
        // Predicated region
        $region101: #{qnet_forward.1} parent=99 // pred_check
          %p2049 = pneg %p439
        $region102: #{qnet_forward.1} parent=99 // pred_check_branch
          %2051 = sbr.rel (%p2049) target = $region104
        $region103: #{qnet_forward.1} parent=99 // pred_region
          %s2052 = sand.u32 %s424, 1
          %s2053 = scalar_lea.sflag [#allocation3], %s2052
          %s2054 = sand.u32 %s424, 1
          %s2055 = scalar_lea.vmem [#allocation2], %s2054
          %2056 = dma.done %s2053, 16
        $region104: #{qnet_forward.1} parent=99 // pred_fallthru
          _
      $region100: #{qnet_forward.1} parent=5 // pred_fallthru
        _
    $region6: #{qnet_forward.1} parent=1 // loop_footer
      %s31 = sadd.s32 1, %s27
    $region7: #{qnet_forward.1} parent=1 // loop_footer_branch
      %26 = sbr.rel target = $region3
    $region8: #{qnet_forward.1} parent=1 // loop_exit
      _
    %2057 = vsyncpa [#allocation3], 1
    %s2058 = scalar_lea.sflag [#allocation3], 1
    %2059 = vsyncpa %s2058, 1

</llo_original>
